<compile_context>
chip_gen: v7x
topology: tpu7x:2x2x1
jax: 0.10.0
libtpu: 0.0.40
codegen_flags: <defaults>
</compile_context>

<pallas_src>
import math

import jax
import jax.numpy as jnp
from jax.experimental import pallas as pl
from jax.experimental.pallas import tpu as pltpu


# ----------------------------------------------------------------------------
# Pallas kernel: per-row-tile hot path
# ----------------------------------------------------------------------------
def _gram_rows_kernel(kti_ref, kt_ref, kii_inv_ref, g_ref, gti_ref, gt_ref):
    """For one tile of rows (exact reference ordering, f32 accumulation):

        A     = Kti @ Kii_inv
        ktt_i = kt - rowsum(A * Kti)
        Gti   = A @ G
        gt    = rowsum(Gti * A) + ktt_i
    """
    cdt = kii_inv_ref.dtype                          # MXU streaming dtype (f32 or bf16)
    kti = kti_ref[...].astype(cdt)                   # (tm, P)

    a = jnp.dot(kti, kii_inv_ref[...],
                preferred_element_type=jnp.float32)  # (tm, P) f32
    gti = jnp.dot(a.astype(cdt), g_ref[...],
                  preferred_element_type=jnp.float32)  # (tm, P) f32

    kti32 = kti.astype(jnp.float32)
    kt32 = kt_ref[...].astype(jnp.float32)           # (tm, 1)
    ktt_i = kt32 - jnp.sum(a * kti32, axis=-1, keepdims=True)
    gt = jnp.sum(gti * a, axis=-1, keepdims=True) + ktt_i

    gti_ref[...] = gti.astype(gti_ref.dtype)
    gt_ref[...] = gt.astype(gt_ref.dtype)


# ----------------------------------------------------------------------------
# Tile sizing (generation-aware VMEM budget, ~2 MiB streamed per grid step)
# ----------------------------------------------------------------------------
def _round_up(x, m):
    return ((x + m - 1) // m) * m


def _vmem_budget():
    """Returns (per-tile live-VMEM budget, vmem_limit_bytes)."""
    phys = 64 * 1024 * 1024                  # conservative default: v7x per-TC VMEM
    try:
        info = pltpu.get_tpu_info()
        phys = int(getattr(info, "vmem_capacity_bytes", phys))
    except Exception:
        pass
    budget = min(48 * 1024 * 1024, (phys * 3) // 4)      # ~48 MiB on all generations
    limit = max(budget + 8 * 1024 * 1024,
                min(phys - 8 * 1024 * 1024, 64 * 1024 * 1024))
    return budget, limit


def _choose_row_tile(Tflat, P, in_itemsize, out_itemsize, budget):
    # Live VMEM per tile row: double-buffered Kti in + Gti out + kt/gt columns,
    # plus the two f32 (tm, P) intermediates (A and Gti).
    bytes_per_row = (2 * P + 2) * in_itemsize + (2 * P + 2) * out_itemsize + 2 * P * 4
    vmem_cap_rows = max(8, (budget // max(1, bytes_per_row)) // 8 * 8)

    # Amortize the ~0.35 us per-grid-step overhead: ~2 MiB of streamed Kti per
    # step keeps each step >= ~1.5 us of HBM traffic even at v7x's 3.2 TB/s.
    target_rows = max(8, (2 * 1024 * 1024) // max(1, P * in_itemsize))

    tm = min(vmem_cap_rows, _round_up(target_rows, 8), _round_up(Tflat, 8))
    tm = max(8, (tm // 8) * 8)

    num_tiles = pl.cdiv(Tflat, tm)
    # Megacore (v7x has 2 TensorCores sharing the "parallel" axis): prefer >= 2
    # grid steps when splitting still leaves >= ~1 MiB of streamed Kti each.
    if num_tiles == 1 and Tflat * P * in_itemsize >= 2 * 1024 * 1024:
        num_tiles = 2
    # Balance tiles so the last grid step is not a tiny ragged remainder.
    if num_tiles > 1:
        tm = max(8, _round_up(pl.cdiv(Tflat, num_tiles), 8))
        num_tiles = pl.cdiv(Tflat, tm)
    return tm, num_tiles


# ----------------------------------------------------------------------------
# Small PxP glue (InverseLogDet.forward with iters=1, use_newtons=False)
# ----------------------------------------------------------------------------
def _spd_inverse(A):
    """inv(A) for SPD A via Cholesky, matching torch cholesky + cholesky_inverse.

    TODO(synk): torch.linalg.cholesky / cholesky_inverse / logdet have no clean
    Pallas equivalent; they stay as tiny PxP jax.scipy / jnp.linalg XLA glue.
    """
    c, lower = jax.scipy.linalg.cho_factor(A, lower=True)
    inv = jax.scipy.linalg.cho_solve((c, lower), jnp.eye(A.shape[0], dtype=A.dtype))
    return 0.5 * (inv + inv.T)          # enforce the symmetry cholesky_inverse gives


# ----------------------------------------------------------------------------
# Wrapper: GramLayerTricks1and2._forward semantics
# ----------------------------------------------------------------------------
def gram_layer_forward(K_ii, K_ti, K_t, V, dof):
    P = K_ii.shape[0]
    ti_dtype = K_ti.dtype
    t_dtype = K_t.dtype

    # InverseLogDet.forward (iters=1, use_newtons=False):
    #   X = cholesky_inverse(cholesky(A)) == inv(A);  backward_logdetK = 0.
    Kii_inv = _spd_inverse(K_ii.astype(jnp.float32))
    backward_logdetK = jnp.zeros((), jnp.float32)

    # G = V @ V.T / V.shape[1]   (Layer.G property)
    V32 = V.astype(jnp.float32)
    G = (V32 @ V32.T) / V32.shape[1]

    # Stream Kti/Kt in their native dtype (no wrapper astype/pad/slice passes:
    # each of those is an extra full HBM pass over the dominant array).  bf16
    # inputs are multiplied on the MXU as bf16 x bf16 -> f32.
    compute_dtype = jnp.bfloat16 if ti_dtype == jnp.bfloat16 else jnp.float32
    Kii_inv_c = Kii_inv.astype(compute_dtype)
    G_c = G.astype(compute_dtype)

    Kti_flat = K_ti.reshape(-1, P)          # free view (collapse leading dims)
    Kt_col = K_t.reshape(-1, 1)             # free view
    Tflat = Kti_flat.shape[0]

    budget, vmem_limit = _vmem_budget()
    tm, num_tiles = _choose_row_tile(
        Tflat, P, Kti_flat.dtype.itemsize, jnp.dtype(ti_dtype).itemsize, budget)

    flops = 4 * Tflat * P * P + 6 * Tflat * P
    bytes_accessed = (
        Tflat * P * 2 * jnp.dtype(ti_dtype).itemsize            # Kti in + Gti out
        + Tflat * 2 * jnp.dtype(t_dtype).itemsize               # kt in + gt out
        + 2 * P * P * jnp.dtype(compute_dtype).itemsize         # Kii_inv + G
    )

    Gti_flat, gt_col = pl.pallas_call(
        _gram_rows_kernel,
        out_shape=(
            jax.ShapeDtypeStruct((Tflat, P), ti_dtype),
            jax.ShapeDtypeStruct((Tflat, 1), t_dtype),
        ),
        grid_spec=pltpu.PrefetchScalarGridSpec(
            num_scalar_prefetch=0,
            grid=(num_tiles,),
            in_specs=[
                pl.BlockSpec((tm, P), lambda i: (i, 0)),     # Kti rows (streamed)
                pl.BlockSpec((tm, 1), lambda i: (i, 0)),     # kt rows
                pl.BlockSpec((P, P), lambda i: (0, 0)),      # Kii_inv (resident)
                pl.BlockSpec((P, P), lambda i: (0, 0)),      # G       (resident)
            ],
            out_specs=[
                pl.BlockSpec((tm, P), lambda i: (i, 0)),     # Gti
                pl.BlockSpec((tm, 1), lambda i: (i, 0)),     # gt
            ],
        ),
        compiler_params=pltpu.CompilerParams(
            dimension_semantics=("parallel",),
            vmem_limit_bytes=vmem_limit,
        ),
        cost_estimate=pl.CostEstimate(
            flops=flops, transcendentals=0, bytes_accessed=bytes_accessed),
    )(Kti_flat, Kt_col, Kii_inv_c, G_c)

    # compute_obj: trace(Kii_inv @ G) and logdet(G) are tiny PxP contractions,
    # cheaper as XLA glue than a dedicated pallas_call.
    trace_term = jnp.einsum("ij,ji->", Kii_inv, G)
    log_det_term = jnp.linalg.slogdet(G)[1] - backward_logdetK
    computed_obj = (-0.5 * dof * (-log_det_term + trace_term - P)).astype(ti_dtype)

    Gii = G.astype(K_ii.dtype)                  # Gii_flat.view(K.ii.shape)
    Gti = Gti_flat.reshape(K_ti.shape)          # already ti_dtype: free view
    gt = gt_col.reshape(K_t.shape)              # already t_dtype:  free view
    return Gii, Gti, gt, computed_obj


# ----------------------------------------------------------------------------
# Pure-JAX reference (mirrors the PyTorch code line by line)
# ----------------------------------------------------------------------------
def gram_layer_forward_ref(K_ii, K_ti, K_t, V, dof):
    P = K_ii.shape[0]
    hi = jax.lax.Precision.HIGHEST
    Kii_inv = _spd_inverse(K_ii.astype(jnp.float32))
    backward_logdetK = jnp.zeros((), jnp.float32)
    V32 = V.astype(jnp.float32)
    G = (V32 @ V32.T) / V32.shape[1]

    Kti_flat = K_ti.reshape(-1, P).astype(jnp.float32)
    Kt_flat = K_t.reshape(-1).astype(jnp.float32)

    A = jnp.dot(Kti_flat, Kii_inv, precision=hi)
    ktt_i = Kt_flat - jnp.sum(A * Kti_flat, -1)
    Gti_flat = jnp.dot(A, G, precision=hi)
    gt_flat = jnp.sum(Gti_flat * A, -1) + ktt_i

    trace_term = jnp.trace(jnp.dot(Kii_inv, G, precision=hi))
    log_det_term = jnp.linalg.slogdet(G)[1] - backward_logdetK
    obj = -0.5 * dof * (-log_det_term + trace_term - P)
    return G, Gti_flat.reshape(K_ti.shape), gt_flat.reshape(K_t.shape), obj


# ----------------------------------------------------------------------------
if __name__ == "__main__":
    P, B, T, D = 16, 2, 64, 8
    dof = 10.0

    key = jax.random.PRNGKey(0)
    kz, kx = jax.random.split(key)
    Z = jax.random.normal(kz, (P, D), dtype=jnp.float32)        # inducing features
    X = jax.random.normal(kx, (B, T, D), dtype=jnp.float32)     # data features

    # Jointly PSD linear kernel so that gt >= 0, as the PyTorch assert requires.
    K_ii = Z @ Z.T + 1e-1 * jnp.eye(P, dtype=jnp.float32)        # (P, P)
    K_ti = jnp.einsum("btd,pd->btp", X, Z)                       # (B, T, P)
    K_t = jnp.einsum("btd,btd->bt", X, X)                        # (B, T)

    # Parameter init from Layer.__init__: V = eye(P) * sqrt(P)   (deterministic)
    V = jnp.eye(P, dtype=jnp.float32) * math.sqrt(P)

    fwd = jax.jit(gram_layer_forward, static_argnums=(4,))
    Gii, Gti, gt, obj = fwd(K_ii, K_ti, K_t, V, dof)
    jax.block_until_ready((Gii, Gti, gt, obj))

    # Mirror the `(-1e-10 < gt_flat).all()` assert from the PyTorch module.
    assert bool((gt > -1e-4).all()), "gt positivity check failed"

    # Correctness vs pure-JAX reference.
    Gii_r, Gti_r, gt_r, obj_r = gram_layer_forward_ref(K_ii, K_ti, K_t, V, dof)
    assert jnp.allclose(Gii, Gii_r, atol=1e-5, rtol=1e-5)
    assert jnp.allclose(Gti, Gti_r, atol=2e-3, rtol=2e-3)
    assert jnp.allclose(gt, gt_r, atol=5e-3, rtol=5e-3)
    assert jnp.allclose(obj, obj_r, atol=1e-2, rtol=1e-3)

    print("KERNEL_OK")
</pallas_src>

<mosaic_0001>
module attributes {stable_mosaic.version = 11 : i64} {
  func.func @_gram_rows_kernel(%arg0: i32, %arg1: memref<128x16xf32, #tpu.memory_space<vmem>>, %arg2: memref<128x1xf32, #tpu.memory_space<vmem>>, %arg3: memref<16x16xf32, #tpu.memory_space<vmem>>, %arg4: memref<16x16xf32, #tpu.memory_space<vmem>>, %arg5: memref<128x16xf32, #tpu.memory_space<vmem>>, %arg6: memref<128x1xf32, #tpu.memory_space<vmem>>) attributes {dimension_semantics = [#tpu.dimension_semantics<parallel>], iteration_bounds = array<i64: 1>, scalar_prefetch = 0 : i64, scratch_operands = 0 : i64, tpu.core_type = #tpu.core_type<tc>, window_params = [{transform_indices = @transform_0, window_bounds = array<i64: 128, 16>}, {transform_indices = @transform_1, window_bounds = array<i64: 128, 1>}, {pipeline_mode = #tpu.pipeline_mode<synchronous>, transform_indices = @transform_2, window_bounds = array<i64: 16, 16>}, {pipeline_mode = #tpu.pipeline_mode<synchronous>, transform_indices = @transform_3, window_bounds = array<i64: 16, 16>}, {transform_indices = @transform_4, window_bounds = array<i64: 128, 16>}, {transform_indices = @transform_5, window_bounds = array<i64: 128, 1>}]} {
    %c0 = arith.constant 0 : index
    %c0_0 = arith.constant 0 : index
    %0 = vector.load %arg1[%c0, %c0_0] : memref<128x16xf32, #tpu.memory_space<vmem>>, vector<128x16xf32>
    %c0_1 = arith.constant 0 : index
    %c0_2 = arith.constant 0 : index
    %1 = vector.load %arg3[%c0_1, %c0_2] : memref<16x16xf32, #tpu.memory_space<vmem>>, vector<16x16xf32>
    %cst = arith.constant dense<0.000000e+00> : vector<128x16xf32>
    %2 = tpu.matmul %0, %1, %cst {dimension_numbers = #tpu.dot_dimension_numbers<[1], [0], [0], [1], [0, 0, 1, 1], [], []>} : vector<128x16xf32>, vector<16x16xf32>, vector<128x16xf32> -> vector<128x16xf32>
    %c0_3 = arith.constant 0 : index
    %c0_4 = arith.constant 0 : index
    %3 = vector.load %arg4[%c0_3, %c0_4] : memref<16x16xf32, #tpu.memory_space<vmem>>, vector<16x16xf32>
    %cst_5 = arith.constant dense<0.000000e+00> : vector<128x16xf32>
    %4 = tpu.matmul %2, %3, %cst_5 {dimension_numbers = #tpu.dot_dimension_numbers<[1], [0], [0], [1], [0, 0, 1, 1], [], []>} : vector<128x16xf32>, vector<16x16xf32>, vector<128x16xf32> -> vector<128x16xf32>
    %c0_6 = arith.constant 0 : index
    %c0_7 = arith.constant 0 : index
    %5 = vector.load %arg2[%c0_6, %c0_7] : memref<128x1xf32, #tpu.memory_space<vmem>>, vector<128x1xf32>
    %6 = arith.mulf %2, %0 : vector<128x16xf32>
    %cst_8 = arith.constant dense<0.000000e+00> : vector<128xf32>
    %7 = vector.multi_reduction <add>, %6, %cst_8 [1] : vector<128x16xf32> to vector<128xf32>
    %8 = vector.shape_cast %7 : vector<128xf32> to vector<128x1xf32>
    %9 = arith.subf %5, %8 : vector<128x1xf32>
    %10 = arith.mulf %4, %2 : vector<128x16xf32>
    %cst_9 = arith.constant dense<0.000000e+00> : vector<128xf32>
    %11 = vector.multi_reduction <add>, %10, %cst_9 [1] : vector<128x16xf32> to vector<128xf32>
    %12 = vector.shape_cast %11 : vector<128xf32> to vector<128x1xf32>
    %13 = arith.addf %12, %9 : vector<128x1xf32>
    %c0_10 = arith.constant 0 : index
    %c0_11 = arith.constant 0 : index
    %14 = vector.load %arg5[%c0_10, %c0_11] : memref<128x16xf32, #tpu.memory_space<vmem>>, vector<128x16xf32>
    tpu.vector_store %arg5[%c0_10, %c0_11], %4 {strides = array<i32>} : memref<128x16xf32, #tpu.memory_space<vmem>>, vector<128x16xf32>,
    %c0_12 = arith.constant 0 : index
    %c0_13 = arith.constant 0 : index
    %15 = vector.load %arg6[%c0_12, %c0_13] : memref<128x1xf32, #tpu.memory_space<vmem>>, vector<128x1xf32>
    tpu.vector_store %arg6[%c0_12, %c0_13], %13 {strides = array<i32>} : memref<128x1xf32, #tpu.memory_space<vmem>>, vector<128x1xf32>,
    return
  }
  func.func @transform_0(%arg0: i32) -> (i32, i32) {
    %c0_i32 = arith.constant 0 : i32
    %c0_i32_0 = arith.constant 0 : i32
    return %arg0, %c0_i32 : i32, i32
  }
  func.func @transform_1(%arg0: i32) -> (i32, i32) {
    %c0_i32 = arith.constant 0 : i32
    %c0_i32_0 = arith.constant 0 : i32
    return %arg0, %c0_i32 : i32, i32
  }
  func.func @transform_2(%arg0: i32) -> (i32, i32) {
    %c0_i32 = arith.constant 0 : i32
    %c0_i32_0 = arith.constant 0 : i32
    %c0_i32_1 = arith.constant 0 : i32
    return %c0_i32, %c0_i32_0 : i32, i32
  }
  func.func @transform_3(%arg0: i32) -> (i32, i32) {
    %c0_i32 = arith.constant 0 : i32
    %c0_i32_0 = arith.constant 0 : i32
    %c0_i32_1 = arith.constant 0 : i32
    return %c0_i32, %c0_i32_0 : i32, i32
  }
  func.func @transform_4(%arg0: i32) -> (i32, i32) {
    %c0_i32 = arith.constant 0 : i32
    %c0_i32_0 = arith.constant 0 : i32
    return %arg0, %c0_i32 : i32, i32
  }
  func.func @transform_5(%arg0: i32) -> (i32, i32) {
    %c0_i32 = arith.constant 0 : i32
    %c0_i32_0 = arith.constant 0 : i32
    return %arg0, %c0_i32 : i32, i32
  }
}

</mosaic_0001>

<llo_original>
// kernel: custom-call.8
$region0: #{custom-call.8}
  %s0 = inlined_call_operand.hbm [shape: f32[16,16], index: 0, kind: input, shape index: {}]
  %s1 = inlined_call_operand.vmem [shape: f32[16,16], index: 1, kind: output, shape index: {}]
  $region1: #{custom-call.8} parent=0
    #allocation0 [shape = 'u8[8192]{0}', space=vmem, size = 0x2000, scoped, tag = 'operand span for operand 0']
    #allocation1 [shape = 's32[1]{0}', space=sflag, size = 0x4, scoped, tag = 'scoped memory for custom-call.8']
    #allocation2 [shape = 'u8[8192]{0}', space=vmem, size = 0x2000, scoped, tag = 'operand span for operand 1']
    %2 = vsyncpa [#allocation1], 0
    %s4 = ssub.s32 256, 256
    %5 = vsyncadd [#allocation1], %s4
    %s6 = sshll.u32 [#allocation0], 4
    %s7 = int_to_ptr.vmem [resolvable:$true] %s6
    %12 = dma.hbm_to_vmem [thread:$0]  %s0, 256, %s7, [#allocation1], 128, 128, 8
    %13 = dma.done [#allocation1], 256
    %14 = vst [vmem:[#allocation2] sm:$0xff] 0.0
    %s15 = scalar_lea.vmem [#allocation2], 8
    %16 = vst [vmem:[%s15] sm:$0xff] 0.0
    %vm17 = vcmask 7168
    %v18 = vld [vmem:[#allocation2] ss:$0 sm:$0xff]
    %v19 = vld [vmem:[#allocation0] ss:$0 sm:$0xff]
    %v20 = vmul.f32 %v18, %v18
    %21 = vadd.xlane.f32.xlu0 %v20
    %v22 = vpop.xlane.xlu0 %21
    %v23 = vsub.f32 %v19, %v22
    %v24 = vrsqrt.pop %v23
    %v25 = vld [vmem:[#allocation0] sm:$0xff]
    %v26 = vld [vmem:[#allocation2] sm:$0xff]
    %v27 = vmul.f32 %v26, %v18
    %28 = vadd.xlane.f32.xlu0 %v27
    %v29 = vpop.xlane.xlu0 %28
    %v30 = vsub.f32 %v25, %v29
    %v31 = vmul.f32 %v30, %v24
    %v32 = vsel %vm17, %v31, 0.0
    %v33 = vadd.f32 %v26, %v32
    %34 = vst [vmem:[#allocation2] sm:$0xff] %v33
    %s35 = scalar_lea.vmem [#allocation0], 8
    %v36 = vld [vmem:[%s35] sm:$0xff]
    %s37 = scalar_lea.vmem [#allocation2], 8
    %v38 = vld [vmem:[%s37] sm:$0xff]
    %v39 = vmul.f32 %v38, %v18
    %40 = vadd.xlane.f32.xlu0 %v39
    %v41 = vpop.xlane.xlu0 %40
    %v42 = vsub.f32 %v36, %v41
    %v43 = vmul.f32 %v42, %v24
    %v44 = vsel %vm17, %v43, 0.0
    %v45 = vadd.f32 %v38, %v44
    %s46 = scalar_lea.vmem [#allocation2], 8
    %47 = vst [vmem:[%s46] sm:$0xff] %v45
    %vm48 = vcmask 15368
    %s49 = scalar_lea.vmem [#allocation2], 1
    %v50 = vld [vmem:[%s49] ss:$0 sm:$0xff]
    %s51 = scalar_lea.vmem [#allocation0], 1
    %v52 = vld [vmem:[%s51] ss:$0 sm:$0xff]
    %v53 = vmul.f32 %v50, %v50
    %54 = vadd.xlane.f32.xlu0 %v53
    %v55 = vpop.xlane.xlu0 %54
    %v56 = vsub.f32 %v52, %v55
    %v57 = vrsqrt.pop %v56
    %v58 = vld [vmem:[#allocation0] sm:$0xff]
    %v59 = vld [vmem:[#allocation2] sm:$0xff]
    %v60 = vmul.f32 %v59, %v50
    %61 = vadd.xlane.f32.xlu0 %v60
    %v62 = vpop.xlane.xlu0 %61
    %v63 = vsub.f32 %v58, %v62
    %v64 = vmul.f32 %v63, %v57
    %vm65 = vcmask 1047553
    %vm66 = vmand %vm48, %vm65
    %v67 = vsel %vm66, %v64, 0.0
    %v68 = vadd.f32 %v59, %v67
    %69 = vst [vmem:[#allocation2] sm:$0xff] %v68
    %s70 = scalar_lea.vmem [#allocation0], 8
    %v71 = vld [vmem:[%s70] sm:$0xff]
    %s72 = scalar_lea.vmem [#allocation2], 8
    %v73 = vld [vmem:[%s72] sm:$0xff]
    %v74 = vmul.f32 %v73, %v50
    %75 = vadd.xlane.f32.xlu0 %v74
    %v76 = vpop.xlane.xlu0 %75
    %v77 = vsub.f32 %v71, %v76
    %v78 = vmul.f32 %v77, %v57
    %v79 = vsel %vm48, %v78, 0.0
    %v80 = vadd.f32 %v73, %v79
    %s81 = scalar_lea.vmem [#allocation2], 8
    %82 = vst [vmem:[%s81] sm:$0xff] %v80
    %vm83 = vcmask 23568
    %s84 = scalar_lea.vmem [#allocation2], 2
    %v85 = vld [vmem:[%s84] ss:$0 sm:$0xff]
    %s86 = scalar_lea.vmem [#allocation0], 2
    %v87 = vld [vmem:[%s86] ss:$0 sm:$0xff]
    %v88 = vmul.f32 %v85, %v85
    %89 = vadd.xlane.f32.xlu0 %v88
    %v90 = vpop.xlane.xlu0 %89
    %v91 = vsub.f32 %v87, %v90
    %v92 = vrsqrt.pop %v91
    %v93 = vld [vmem:[#allocation0] sm:$0xff]
    %v94 = vld [vmem:[#allocation2] sm:$0xff]
    %v95 = vmul.f32 %v94, %v85
    %96 = vadd.xlane.f32.xlu0 %v95
    %v97 = vpop.xlane.xlu0 %96
    %v98 = vsub.f32 %v93, %v97
    %v99 = vmul.f32 %v98, %v92
    %vm100 = vcmask 1047554
    %vm101 = vmand %vm83, %vm100
    %v102 = vsel %vm101, %v99, 0.0
    %v103 = vadd.f32 %v94, %v102
    %104 = vst [vmem:[#allocation2] sm:$0xff] %v103
    %s105 = scalar_lea.vmem [#allocation0], 8
    %v106 = vld [vmem:[%s105] sm:$0xff]
    %s107 = scalar_lea.vmem [#allocation2], 8
    %v108 = vld [vmem:[%s107] sm:$0xff]
    %v109 = vmul.f32 %v108, %v85
    %110 = vadd.xlane.f32.xlu0 %v109
    %v111 = vpop.xlane.xlu0 %110
    %v112 = vsub.f32 %v106, %v111
    %v113 = vmul.f32 %v112, %v92
    %v114 = vsel %vm83, %v113, 0.0
    %v115 = vadd.f32 %v108, %v114
    %s116 = scalar_lea.vmem [#allocation2], 8
    %117 = vst [vmem:[%s116] sm:$0xff] %v115
    %vm118 = vcmask 31768
    %s119 = scalar_lea.vmem [#allocation2], 3
    %v120 = vld [vmem:[%s119] ss:$0 sm:$0xff]
    %s121 = scalar_lea.vmem [#allocation0], 3
    %v122 = vld [vmem:[%s121] ss:$0 sm:$0xff]
    %v123 = vmul.f32 %v120, %v120
    %124 = vadd.xlane.f32.xlu0 %v123
    %v125 = vpop.xlane.xlu0 %124
    %v126 = vsub.f32 %v122, %v125
    %v127 = vrsqrt.pop %v126
    %v128 = vld [vmem:[#allocation0] sm:$0xff]
    %v129 = vld [vmem:[#allocation2] sm:$0xff]
    %v130 = vmul.f32 %v129, %v120
    %131 = vadd.xlane.f32.xlu0 %v130
    %v132 = vpop.xlane.xlu0 %131
    %v133 = vsub.f32 %v128, %v132
    %v134 = vmul.f32 %v133, %v127
    %vm135 = vcmask 1047555
    %vm136 = vmand %vm118, %vm135
    %v137 = vsel %vm136, %v134, 0.0
    %v138 = vadd.f32 %v129, %v137
    %139 = vst [vmem:[#allocation2] sm:$0xff] %v138
    %s140 = scalar_lea.vmem [#allocation0], 8
    %v141 = vld [vmem:[%s140] sm:$0xff]
    %s142 = scalar_lea.vmem [#allocation2], 8
    %v143 = vld [vmem:[%s142] sm:$0xff]
    %v144 = vmul.f32 %v143, %v120
    %145 = vadd.xlane.f32.xlu0 %v144
    %v146 = vpop.xlane.xlu0 %145
    %v147 = vsub.f32 %v141, %v146
    %v148 = vmul.f32 %v147, %v127
    %v149 = vsel %vm118, %v148, 0.0
    %v150 = vadd.f32 %v143, %v149
    %s151 = scalar_lea.vmem [#allocation2], 8
    %152 = vst [vmem:[%s151] sm:$0xff] %v150
    %vm153 = vcmask 39968
    %s154 = scalar_lea.vmem [#allocation2], 4
    %v155 = vld [vmem:[%s154] ss:$0 sm:$0xff]
    %s156 = scalar_lea.vmem [#allocation0], 4
    %v157 = vld [vmem:[%s156] ss:$0 sm:$0xff]
    %v158 = vmul.f32 %v155, %v155
    %159 = vadd.xlane.f32.xlu0 %v158
    %v160 = vpop.xlane.xlu0 %159
    %v161 = vsub.f32 %v157, %v160
    %v162 = vrsqrt.pop %v161
    %v163 = vld [vmem:[#allocation0] sm:$0xff]
    %v164 = vld [vmem:[#allocation2] sm:$0xff]
    %v165 = vmul.f32 %v164, %v155
    %166 = vadd.xlane.f32.xlu0 %v165
    %v167 = vpop.xlane.xlu0 %166
    %v168 = vsub.f32 %v163, %v167
    %v169 = vmul.f32 %v168, %v162
    %vm170 = vcmask 1047556
    %vm171 = vmand %vm153, %vm170
    %v172 = vsel %vm171, %v169, 0.0
    %v173 = vadd.f32 %v164, %v172
    %174 = vst [vmem:[#allocation2] sm:$0xff] %v173
    %s175 = scalar_lea.vmem [#allocation0], 8
    %v176 = vld [vmem:[%s175] sm:$0xff]
    %s177 = scalar_lea.vmem [#allocation2], 8
    %v178 = vld [vmem:[%s177] sm:$0xff]
    %v179 = vmul.f32 %v178, %v155
    %180 = vadd.xlane.f32.xlu0 %v179
    %v181 = vpop.xlane.xlu0 %180
    %v182 = vsub.f32 %v176, %v181
    %v183 = vmul.f32 %v182, %v162
    %v184 = vsel %vm153, %v183, 0.0
    %v185 = vadd.f32 %v178, %v184
    %s186 = scalar_lea.vmem [#allocation2], 8
    %187 = vst [vmem:[%s186] sm:$0xff] %v185
    %vm188 = vcmask 48168
    %s189 = scalar_lea.vmem [#allocation2], 5
    %v190 = vld [vmem:[%s189] ss:$0 sm:$0xff]
    %s191 = scalar_lea.vmem [#allocation0], 5
    %v192 = vld [vmem:[%s191] ss:$0 sm:$0xff]
    %v193 = vmul.f32 %v190, %v190
    %194 = vadd.xlane.f32.xlu0 %v193
    %v195 = vpop.xlane.xlu0 %194
    %v196 = vsub.f32 %v192, %v195
    %v197 = vrsqrt.pop %v196
    %v198 = vld [vmem:[#allocation0] sm:$0xff]
    %v199 = vld [vmem:[#allocation2] sm:$0xff]
    %v200 = vmul.f32 %v199, %v190
    %201 = vadd.xlane.f32.xlu0 %v200
    %v202 = vpop.xlane.xlu0 %201
    %v203 = vsub.f32 %v198, %v202
    %v204 = vmul.f32 %v203, %v197
    %vm205 = vcmask 1047557
    %vm206 = vmand %vm188, %vm205
    %v207 = vsel %vm206, %v204, 0.0
    %v208 = vadd.f32 %v199, %v207
    %209 = vst [vmem:[#allocation2] sm:$0xff] %v208
    %s210 = scalar_lea.vmem [#allocation0], 8
    %v211 = vld [vmem:[%s210] sm:$0xff]
    %s212 = scalar_lea.vmem [#allocation2], 8
    %v213 = vld [vmem:[%s212] sm:$0xff]
    %v214 = vmul.f32 %v213, %v190
    %215 = vadd.xlane.f32.xlu0 %v214
    %v216 = vpop.xlane.xlu0 %215
    %v217 = vsub.f32 %v211, %v216
    %v218 = vmul.f32 %v217, %v197
    %v219 = vsel %vm188, %v218, 0.0
    %v220 = vadd.f32 %v213, %v219
    %s221 = scalar_lea.vmem [#allocation2], 8
    %222 = vst [vmem:[%s221] sm:$0xff] %v220
    %vm223 = vcmask 56368
    %s224 = scalar_lea.vmem [#allocation2], 6
    %v225 = vld [vmem:[%s224] ss:$0 sm:$0xff]
    %s226 = scalar_lea.vmem [#allocation0], 6
    %v227 = vld [vmem:[%s226] ss:$0 sm:$0xff]
    %v228 = vmul.f32 %v225, %v225
    %229 = vadd.xlane.f32.xlu0 %v228
    %v230 = vpop.xlane.xlu0 %229
    %v231 = vsub.f32 %v227, %v230
    %v232 = vrsqrt.pop %v231
    %v233 = vld [vmem:[#allocation0] sm:$0xff]
    %v234 = vld [vmem:[#allocation2] sm:$0xff]
    %v235 = vmul.f32 %v234, %v225
    %236 = vadd.xlane.f32.xlu0 %v235
    %v237 = vpop.xlane.xlu0 %236
    %v238 = vsub.f32 %v233, %v237
    %v239 = vmul.f32 %v238, %v232
    %vm240 = vcmask 1047558
    %vm241 = vmand %vm223, %vm240
    %v242 = vsel %vm241, %v239, 0.0
    %v243 = vadd.f32 %v234, %v242
    %244 = vst [vmem:[#allocation2] sm:$0xff] %v243
    %s245 = scalar_lea.vmem [#allocation0], 8
    %v246 = vld [vmem:[%s245] sm:$0xff]
    %s247 = scalar_lea.vmem [#allocation2], 8
    %v248 = vld [vmem:[%s247] sm:$0xff]
    %v249 = vmul.f32 %v248, %v225
    %250 = vadd.xlane.f32.xlu0 %v249
    %v251 = vpop.xlane.xlu0 %250
    %v252 = vsub.f32 %v246, %v251
    %v253 = vmul.f32 %v252, %v232
    %v254 = vsel %vm223, %v253, 0.0
    %v255 = vadd.f32 %v248, %v254
    %s256 = scalar_lea.vmem [#allocation2], 8
    %257 = vst [vmem:[%s256] sm:$0xff] %v255
    %vm258 = vcmask 64568
    %s259 = scalar_lea.vmem [#allocation2], 7
    %v260 = vld [vmem:[%s259] ss:$0 sm:$0xff]
    %s261 = scalar_lea.vmem [#allocation0], 7
    %v262 = vld [vmem:[%s261] ss:$0 sm:$0xff]
    %v263 = vmul.f32 %v260, %v260
    %264 = vadd.xlane.f32.xlu0 %v263
    %v265 = vpop.xlane.xlu0 %264
    %v266 = vsub.f32 %v262, %v265
    %v267 = vrsqrt.pop %v266
    %v268 = vld [vmem:[#allocation0] sm:$0xff]
    %v269 = vld [vmem:[#allocation2] sm:$0xff]
    %v270 = vmul.f32 %v269, %v260
    %271 = vadd.xlane.f32.xlu0 %v270
    %v272 = vpop.xlane.xlu0 %271
    %v273 = vsub.f32 %v268, %v272
    %v274 = vmul.f32 %v273, %v267
    %vm275 = vcmask 1047559
    %vm276 = vmand %vm258, %vm275
    %v277 = vsel %vm276, %v274, 0.0
    %v278 = vadd.f32 %v269, %v277
    %279 = vst [vmem:[#allocation2] sm:$0xff] %v278
    %s280 = scalar_lea.vmem [#allocation0], 8
    %v281 = vld [vmem:[%s280] sm:$0xff]
    %s282 = scalar_lea.vmem [#allocation2], 8
    %v283 = vld [vmem:[%s282] sm:$0xff]
    %v284 = vmul.f32 %v283, %v260
    %285 = vadd.xlane.f32.xlu0 %v284
    %v286 = vpop.xlane.xlu0 %285
    %v287 = vsub.f32 %v281, %v286
    %v288 = vmul.f32 %v287, %v267
    %v289 = vsel %vm258, %v288, 0.0
    %v290 = vadd.f32 %v283, %v289
    %s291 = scalar_lea.vmem [#allocation2], 8
    %292 = vst [vmem:[%s291] sm:$0xff] %v290
    %vm293 = vcmask 72768
    %s294 = scalar_lea.vmem [#allocation2], 8
    %v295 = vld [vmem:[%s294] ss:$0 sm:$0xff]
    %s296 = scalar_lea.vmem [#allocation0], 8
    %v297 = vld [vmem:[%s296] ss:$0 sm:$0xff]
    %v298 = vmul.f32 %v295, %v295
    %299 = vadd.xlane.f32.xlu0 %v298
    %v300 = vpop.xlane.xlu0 %299
    %v301 = vsub.f32 %v297, %v300
    %v302 = vrsqrt.pop %v301
    %s303 = scalar_lea.vmem [#allocation0], 8
    %v304 = vld [vmem:[%s303] sm:$0xff]
    %s305 = scalar_lea.vmem [#allocation2], 8
    %v306 = vld [vmem:[%s305] sm:$0xff]
    %v307 = vmul.f32 %v306, %v295
    %308 = vadd.xlane.f32.xlu0 %v307
    %v309 = vpop.xlane.xlu0 %308
    %v310 = vsub.f32 %v304, %v309
    %v311 = vmul.f32 %v310, %v302
    %v312 = vsel %vm293, %v311, 0.0
    %v313 = vadd.f32 %v306, %v312
    %s314 = scalar_lea.vmem [#allocation2], 8
    %315 = vst [vmem:[%s314] sm:$0xff] %v313
    %vm316 = vcmask 80968
    %s317 = scalar_lea.vmem [#allocation2], 9
    %v318 = vld [vmem:[%s317] ss:$0 sm:$0xff]
    %s319 = scalar_lea.vmem [#allocation0], 9
    %v320 = vld [vmem:[%s319] ss:$0 sm:$0xff]
    %v321 = vmul.f32 %v318, %v318
    %322 = vadd.xlane.f32.xlu0 %v321
    %v323 = vpop.xlane.xlu0 %322
    %v324 = vsub.f32 %v320, %v323
    %v325 = vrsqrt.pop %v324
    %s326 = scalar_lea.vmem [#allocation0], 8
    %v327 = vld [vmem:[%s326] sm:$0xff]
    %s328 = scalar_lea.vmem [#allocation2], 8
    %v329 = vld [vmem:[%s328] sm:$0xff]
    %v330 = vmul.f32 %v329, %v318
    %331 = vadd.xlane.f32.xlu0 %v330
    %v332 = vpop.xlane.xlu0 %331
    %v333 = vsub.f32 %v327, %v332
    %v334 = vmul.f32 %v333, %v325
    %vm335 = vcmask 1047553
    %vm336 = vmand %vm316, %vm335
    %v337 = vsel %vm336, %v334, 0.0
    %v338 = vadd.f32 %v329, %v337
    %s339 = scalar_lea.vmem [#allocation2], 8
    %340 = vst [vmem:[%s339] sm:$0xff] %v338
    %vm341 = vcmask 89168
    %s342 = scalar_lea.vmem [#allocation2], 10
    %v343 = vld [vmem:[%s342] ss:$0 sm:$0xff]
    %s344 = scalar_lea.vmem [#allocation0], 10
    %v345 = vld [vmem:[%s344] ss:$0 sm:$0xff]
    %v346 = vmul.f32 %v343, %v343
    %347 = vadd.xlane.f32.xlu0 %v346
    %v348 = vpop.xlane.xlu0 %347
    %v349 = vsub.f32 %v345, %v348
    %v350 = vrsqrt.pop %v349
    %s351 = scalar_lea.vmem [#allocation0], 8
    %v352 = vld [vmem:[%s351] sm:$0xff]
    %s353 = scalar_lea.vmem [#allocation2], 8
    %v354 = vld [vmem:[%s353] sm:$0xff]
    %v355 = vmul.f32 %v354, %v343
    %356 = vadd.xlane.f32.xlu0 %v355
    %v357 = vpop.xlane.xlu0 %356
    %v358 = vsub.f32 %v352, %v357
    %v359 = vmul.f32 %v358, %v350
    %vm360 = vcmask 1047554
    %vm361 = vmand %vm341, %vm360
    %v362 = vsel %vm361, %v359, 0.0
    %v363 = vadd.f32 %v354, %v362
    %s364 = scalar_lea.vmem [#allocation2], 8
    %365 = vst [vmem:[%s364] sm:$0xff] %v363
    %vm366 = vcmask 97368
    %s367 = scalar_lea.vmem [#allocation2], 11
    %v368 = vld [vmem:[%s367] ss:$0 sm:$0xff]
    %s369 = scalar_lea.vmem [#allocation0], 11
    %v370 = vld [vmem:[%s369] ss:$0 sm:$0xff]
    %v371 = vmul.f32 %v368, %v368
    %372 = vadd.xlane.f32.xlu0 %v371
    %v373 = vpop.xlane.xlu0 %372
    %v374 = vsub.f32 %v370, %v373
    %v375 = vrsqrt.pop %v374
    %s376 = scalar_lea.vmem [#allocation0], 8
    %v377 = vld [vmem:[%s376] sm:$0xff]
    %s378 = scalar_lea.vmem [#allocation2], 8
    %v379 = vld [vmem:[%s378] sm:$0xff]
    %v380 = vmul.f32 %v379, %v368
    %381 = vadd.xlane.f32.xlu0 %v380
    %v382 = vpop.xlane.xlu0 %381
    %v383 = vsub.f32 %v377, %v382
    %v384 = vmul.f32 %v383, %v375
    %vm385 = vcmask 1047555
    %vm386 = vmand %vm366, %vm385
    %v387 = vsel %vm386, %v384, 0.0
    %v388 = vadd.f32 %v379, %v387
    %s389 = scalar_lea.vmem [#allocation2], 8
    %390 = vst [vmem:[%s389] sm:$0xff] %v388
    %vm391 = vcmask 105568
    %s392 = scalar_lea.vmem [#allocation2], 12
    %v393 = vld [vmem:[%s392] ss:$0 sm:$0xff]
    %s394 = scalar_lea.vmem [#allocation0], 12
    %v395 = vld [vmem:[%s394] ss:$0 sm:$0xff]
    %v396 = vmul.f32 %v393, %v393
    %397 = vadd.xlane.f32.xlu0 %v396
    %v398 = vpop.xlane.xlu0 %397
    %v399 = vsub.f32 %v395, %v398
    %v400 = vrsqrt.pop %v399
    %s401 = scalar_lea.vmem [#allocation0], 8
    %v402 = vld [vmem:[%s401] sm:$0xff]
    %s403 = scalar_lea.vmem [#allocation2], 8
    %v404 = vld [vmem:[%s403] sm:$0xff]
    %v405 = vmul.f32 %v404, %v393
    %406 = vadd.xlane.f32.xlu0 %v405
    %v407 = vpop.xlane.xlu0 %406
    %v408 = vsub.f32 %v402, %v407
    %v409 = vmul.f32 %v408, %v400
    %vm410 = vcmask 1047556
    %vm411 = vmand %vm391, %vm410
    %v412 = vsel %vm411, %v409, 0.0
    %v413 = vadd.f32 %v404, %v412
    %s414 = scalar_lea.vmem [#allocation2], 8
    %415 = vst [vmem:[%s414] sm:$0xff] %v413
    %vm416 = vcmask 113768
    %s417 = scalar_lea.vmem [#allocation2], 13
    %v418 = vld [vmem:[%s417] ss:$0 sm:$0xff]
    %s419 = scalar_lea.vmem [#allocation0], 13
    %v420 = vld [vmem:[%s419] ss:$0 sm:$0xff]
    %v421 = vmul.f32 %v418, %v418
    %422 = vadd.xlane.f32.xlu0 %v421
    %v423 = vpop.xlane.xlu0 %422
    %v424 = vsub.f32 %v420, %v423
    %v425 = vrsqrt.pop %v424
    %s426 = scalar_lea.vmem [#allocation0], 8
    %v427 = vld [vmem:[%s426] sm:$0xff]
    %s428 = scalar_lea.vmem [#allocation2], 8
    %v429 = vld [vmem:[%s428] sm:$0xff]
    %v430 = vmul.f32 %v429, %v418
    %431 = vadd.xlane.f32.xlu0 %v430
    %v432 = vpop.xlane.xlu0 %431
    %v433 = vsub.f32 %v427, %v432
    %v434 = vmul.f32 %v433, %v425
    %vm435 = vcmask 1047557
    %vm436 = vmand %vm416, %vm435
    %v437 = vsel %vm436, %v434, 0.0
    %v438 = vadd.f32 %v429, %v437
    %s439 = scalar_lea.vmem [#allocation2], 8
    %440 = vst [vmem:[%s439] sm:$0xff] %v438
    %vm441 = vcmask 121968
    %s442 = scalar_lea.vmem [#allocation2], 14
    %v443 = vld [vmem:[%s442] ss:$0 sm:$0xff]
    %s444 = scalar_lea.vmem [#allocation0], 14
    %v445 = vld [vmem:[%s444] ss:$0 sm:$0xff]
    %v446 = vmul.f32 %v443, %v443
    %447 = vadd.xlane.f32.xlu0 %v446
    %v448 = vpop.xlane.xlu0 %447
    %v449 = vsub.f32 %v445, %v448
    %v450 = vrsqrt.pop %v449
    %s451 = scalar_lea.vmem [#allocation0], 8
    %v452 = vld [vmem:[%s451] sm:$0xff]
    %s453 = scalar_lea.vmem [#allocation2], 8
    %v454 = vld [vmem:[%s453] sm:$0xff]
    %v455 = vmul.f32 %v454, %v443
    %456 = vadd.xlane.f32.xlu0 %v455
    %v457 = vpop.xlane.xlu0 %456
    %v458 = vsub.f32 %v452, %v457
    %v459 = vmul.f32 %v458, %v450
    %vm460 = vcmask 1047558
    %vm461 = vmand %vm441, %vm460
    %v462 = vsel %vm461, %v459, 0.0
    %v463 = vadd.f32 %v454, %v462
    %s464 = scalar_lea.vmem [#allocation2], 8
    %465 = vst [vmem:[%s464] sm:$0xff] %v463
    %vm466 = vcmask 130168
    %s467 = scalar_lea.vmem [#allocation2], 15
    %v468 = vld [vmem:[%s467] ss:$0 sm:$0xff]
    %s469 = scalar_lea.vmem [#allocation0], 15
    %v470 = vld [vmem:[%s469] ss:$0 sm:$0xff]
    %v471 = vmul.f32 %v468, %v468
    %472 = vadd.xlane.f32.xlu0 %v471
    %v473 = vpop.xlane.xlu0 %472
    %v474 = vsub.f32 %v470, %v473
    %v475 = vrsqrt.pop %v474
    %s476 = scalar_lea.vmem [#allocation0], 8
    %v477 = vld [vmem:[%s476] sm:$0xff]
    %s478 = scalar_lea.vmem [#allocation2], 8
    %v479 = vld [vmem:[%s478] sm:$0xff]
    %v480 = vmul.f32 %v479, %v468
    %481 = vadd.xlane.f32.xlu0 %v480
    %v482 = vpop.xlane.xlu0 %481
    %v483 = vsub.f32 %v477, %v482
    %v484 = vmul.f32 %v483, %v475
    %vm485 = vcmask 1047559
    %vm486 = vmand %vm466, %vm485
    %v487 = vsel %vm486, %v484, 0.0
    %v488 = vadd.f32 %v479, %v487
    %s489 = scalar_lea.vmem [#allocation2], 8
    %490 = vst [vmem:[%s489] sm:$0xff] %v488
    // Predicated region
    $region2: #{custom-call.8} parent=1 // pred_check
      _
    $region3: #{custom-call.8} parent=1 // pred_check_branch
      %492 = sbr.rel (0) target = $region5
    $region4: #{custom-call.8} parent=1 // pred_region
      // Predicated region
      $region6: #{custom-call.8} parent=4 // pred_check
        _
      $region7: #{custom-call.8} parent=4 // pred_check_branch
        %494 = sbr.rel (0) target = $region9
      $region8: #{custom-call.8} parent=4 // pred_region
        // Predicated region
        $region21: #{custom-call.8} parent=8 // pred_check
          _
        $region22: #{custom-call.8} parent=8 // pred_check_branch
          %511 = sbr.rel (0) target = $region24
        $region23: #{custom-call.8} parent=8 // pred_region
          loop: start=0, step=1, limit=1
          $region25: #{custom-call.8} parent=23 // loop_pre_header
            _
          $region26: #{custom-call.8} parent=23 // loop_header
            %s513 = sphi 0, %s517
            %p514 = scmp.ge.s32.totalorder %s513, 1
            %s518 = sphi [#allocation2], [#allocation2]
            %s519 = sphi %s1, %s1
          $region27: #{custom-call.8} parent=23 // loop_header_branch
            %516 = sbr.rel (%p514) target = $region31
          $region28: #{custom-call.8} parent=23 // loop_body
            %v520 = vld [vmem:[%s518] sm:$0xff]
            %521 = vst [vmem:[%s519] sm:$0xff] %v520
            %v522 = vld [vmem:[%s518 + $0x8] sm:$0xff]
            %523 = vst [vmem:[%s519 + $0x8] sm:$0xff] %v522
          $region29: #{custom-call.8} parent=23 // loop_footer
            %s517 = sadd.s32 1, %s513
          $region30: #{custom-call.8} parent=23 // loop_footer_branch
            %512 = sbr.rel target = $region26
          $region31: #{custom-call.8} parent=23 // loop_exit
            _
        $region24: #{custom-call.8} parent=8 // pred_fallthru
          _
        // Predicated region
        $region32: #{custom-call.8} parent=8 // pred_check
          _
        $region33: #{custom-call.8} parent=8 // pred_check_branch
          %525 = sbr.rel target = $region35
        $region34: #{custom-call.8} parent=8 // pred_region
          _
        $region35: #{custom-call.8} parent=8 // pred_fallthru
          _
      $region9: #{custom-call.8} parent=4 // pred_fallthru
        _
      // Predicated region
      $region10: #{custom-call.8} parent=4 // pred_check
        _
      $region11: #{custom-call.8} parent=4 // pred_check_branch
        %496 = sbr.rel target = $region13
      $region12: #{custom-call.8} parent=4 // pred_region
        loop: start=0, step=1, limit=1
        $region14: #{custom-call.8} parent=12 // loop_pre_header
          _
        $region15: #{custom-call.8} parent=12 // loop_header
          %s499 = sphi 0, %s503
          %p500 = scmp.ge.s32.totalorder %s499, 1
          %s504 = sphi [#allocation2], [#allocation2]
          %s505 = sphi %s1, %s1
        $region16: #{custom-call.8} parent=12 // loop_header_branch
          %502 = sbr.rel (%p500) target = $region20
        $region17: #{custom-call.8} parent=12 // loop_body
          %v506 = vld [vmem:[%s504] sm:$0xff]
          %507 = vst [vmem:[%s505] sm:$0xff] %v506
          %v508 = vld [vmem:[%s504 + $0x8] sm:$0xff]
          %509 = vst [vmem:[%s505 + $0x8] sm:$0xff] %v508
        $region18: #{custom-call.8} parent=12 // loop_footer
          %s503 = sadd.s32 1, %s499
        $region19: #{custom-call.8} parent=12 // loop_footer_branch
          %498 = sbr.rel target = $region15
        $region20: #{custom-call.8} parent=12 // loop_exit
          _
      $region13: #{custom-call.8} parent=4 // pred_fallthru
        _
    $region5: #{custom-call.8} parent=1 // pred_fallthru
      _
    %526 = vnop
    %527 = vsyncpa [#allocation1], 1

// kernel: custom-call.9
$region0: #{custom-call.9}
  %s0 = inlined_call_operand.vmem [shape: f32[1,16,16], index: 0, kind: input, shape index: {}]
  %s1 = inlined_call_operand.vmem [shape: f32[1,16,16], index: 1, kind: output, shape index: {}]
  $region1: #{custom-call.9} parent=0
    #allocation0 [shape = 'u8[8192]{0}', space=vmem, size = 0x2000, scoped, tag = 'operand span for operand 0']
    #allocation1 [shape = 'u8[8192]{0}', space=vmem, size = 0x2000, scoped, tag = 'operand span for operand 1']
    #allocation2 [shape = 'f32[16,16]{1,0}', space=vmem, size = 0x2000, scoped, tag = 'rescaled input a']
    // Predicated region
    $region2: #{custom-call.9} parent=1 // pred_check
      _
    $region3: #{custom-call.9} parent=1 // pred_check_branch
      %3 = sbr.rel (0) target = $region5
    $region4: #{custom-call.9} parent=1 // pred_region
      // Predicated region
      $region6: #{custom-call.9} parent=4 // pred_check
        _
      $region7: #{custom-call.9} parent=4 // pred_check_branch
        %5 = sbr.rel (0) target = $region9
      $region8: #{custom-call.9} parent=4 // pred_region
        // Predicated region
        $region21: #{custom-call.9} parent=8 // pred_check
          _
        $region22: #{custom-call.9} parent=8 // pred_check_branch
          %22 = sbr.rel (0) target = $region24
        $region23: #{custom-call.9} parent=8 // pred_region
          loop: start=0, step=1, limit=1
          $region25: #{custom-call.9} parent=23 // loop_pre_header
            _
          $region26: #{custom-call.9} parent=23 // loop_header
            %s24 = sphi 0, %s28
            %p25 = scmp.ge.s32.totalorder %s24, 1
            %s29 = sphi %s0, %s0
            %s30 = sphi [#allocation0], [#allocation0]
          $region27: #{custom-call.9} parent=23 // loop_header_branch
            %27 = sbr.rel (%p25) target = $region31
          $region28: #{custom-call.9} parent=23 // loop_body
            %v31 = vld [vmem:[%s29] sm:$0xff]
            %32 = vst [vmem:[%s30] sm:$0xff] %v31
            %v33 = vld [vmem:[%s29 + $0x8] sm:$0xff]
            %34 = vst [vmem:[%s30 + $0x8] sm:$0xff] %v33
          $region29: #{custom-call.9} parent=23 // loop_footer
            %s28 = sadd.s32 1, %s24
          $region30: #{custom-call.9} parent=23 // loop_footer_branch
            %23 = sbr.rel target = $region26
          $region31: #{custom-call.9} parent=23 // loop_exit
            _
        $region24: #{custom-call.9} parent=8 // pred_fallthru
          _
        // Predicated region
        $region32: #{custom-call.9} parent=8 // pred_check
          _
        $region33: #{custom-call.9} parent=8 // pred_check_branch
          %36 = sbr.rel target = $region35
        $region34: #{custom-call.9} parent=8 // pred_region
          _
        $region35: #{custom-call.9} parent=8 // pred_fallthru
          _
      $region9: #{custom-call.9} parent=4 // pred_fallthru
        _
      // Predicated region
      $region10: #{custom-call.9} parent=4 // pred_check
        _
      $region11: #{custom-call.9} parent=4 // pred_check_branch
        %7 = sbr.rel target = $region13
      $region12: #{custom-call.9} parent=4 // pred_region
        loop: start=0, step=1, limit=1
        $region14: #{custom-call.9} parent=12 // loop_pre_header
          _
        $region15: #{custom-call.9} parent=12 // loop_header
          %s10 = sphi 0, %s14
          %p11 = scmp.ge.s32.totalorder %s10, 1
          %s15 = sphi %s0, %s0
          %s16 = sphi [#allocation0], [#allocation0]
        $region16: #{custom-call.9} parent=12 // loop_header_branch
          %13 = sbr.rel (%p11) target = $region20
        $region17: #{custom-call.9} parent=12 // loop_body
          %v17 = vld [vmem:[%s15] sm:$0xff]
          %18 = vst [vmem:[%s16] sm:$0xff] %v17
          %v19 = vld [vmem:[%s15 + $0x8] sm:$0xff]
          %20 = vst [vmem:[%s16 + $0x8] sm:$0xff] %v19
        $region18: #{custom-call.9} parent=12 // loop_footer
          %s14 = sadd.s32 1, %s10
        $region19: #{custom-call.9} parent=12 // loop_footer_branch
          %9 = sbr.rel target = $region15
        $region20: #{custom-call.9} parent=12 // loop_exit
          _
      $region13: #{custom-call.9} parent=4 // pred_fallthru
        _
    $region5: #{custom-call.9} parent=1 // pred_fallthru
      _
    %37 = vnop
    %v38 = vlaneseq
    %v39 = vand.u32 %v38, 127
    %vm40 = vcmp.lt.s32.totalorder %v39, 16
    %v41 = vlaneseq
    %v42 = vshrl.u32 %v41, 7
    %vm44 = vcmp.eq.s32.totalorder %v42, %v39
    %v45 = vld [vmem:[#allocation0] sm:$0xff]
    %v46 = vsel %vm44, %v45, 0.0
    %47 = vadd.xlane.f32.xlu0 %v46
    %v48 = vpop.xlane.xlu0 %47
    %vm49 = vcmp.ge.s32.totalorder %v42, %v39
    %vm50 = vmand %vm49, %vm40
    %v51 = vsel %vm50, %v45, 0.0
    %v52 = vrcp.pop %v48
    %v53 = vmul.f32 %v51, %v52
    %54 = vst [vmem:[#allocation2] sm:$0xff] %v53
    %s55 = scalar_lea.vmem [#allocation0], 8
    %s56 = scalar_lea.vmem [#allocation2], 8
    %v57 = vlaneseq
    %v58 = vshrl.u32 %v57, 7
    %v59 = vadd.s32 %v58, 8
    %vm60 = vcmp.eq.s32.totalorder %v59, %v39
    %v61 = vld [vmem:[%s55] sm:$0xff]
    %v62 = vsel %vm60, %v61, 0.0
    %63 = vadd.xlane.f32.xlu0 %v62
    %v64 = vpop.xlane.xlu0 %63
    %vm65 = vcmp.ge.s32.totalorder %v59, %v39
    %vm66 = vmand %vm65, %vm40
    %v67 = vsel %vm66, %v61, 0.0
    %v68 = vrcp.pop %v64
    %v69 = vmul.f32 %v67, %v68
    %70 = vst [vmem:[%s56] sm:$0xff] %v69
    %v71 = vlaneseq
    %v72 = vand.u32 %v71, 127
    %v73 = vlaneseq
    %v74 = vshrl.u32 %v73, 7
    %vm76 = vcmp.eq.s32.totalorder %v72, %v74
    %v77 = vlaneseq
    %v78 = vand.u32 %v77, 127
    %vm79 = vcmp.eq.s32.totalorder %v78, 0
    %v80 = vsel %vm79, 1.0, -1.0
    %v81 = vsel %vm76, %v80, 0.0
    %v82 = vlaneseq
    %v83 = vand.u32 %v82, 127
    %v84 = vlaneseq
    %v85 = vshrl.u32 %v84, 7
    %v86 = vadd.s32 %v85, 8
    %vm87 = vcmp.eq.s32.totalorder %v83, %v86
    %v88 = vsel %vm87, -1.0, 0.0
    %s89 = scalar_lea.vmem [#allocation2], 1
    %v90 = vld [vmem:[%s89] ss:$0 sm:$0xff]
    %v91 = vxor.u32 %v90, 2147483648
    %v92 = vlaneseq
    %v93 = vand.u32 %v92, 127
    %vm94 = vcmp.eq.s32.totalorder %v93, 1
    %v95 = vmul.f32 %v91, %v81
    %96 = vadd.xlane.f32.xlu0 %v95
    %v97 = vpop.xlane.xlu0 %96
    %v98 = vsel %vm94, %v97, %v81
    %s99 = scalar_lea.vmem [#allocation2], 2
    %v100 = vld [vmem:[%s99] ss:$0 sm:$0xff]
    %v101 = vxor.u32 %v100, 2147483648
    %v102 = vlaneseq
    %v103 = vand.u32 %v102, 127
    %vm104 = vcmp.eq.s32.totalorder %v103, 2
    %v105 = vmul.f32 %v101, %v98
    %106 = vadd.xlane.f32.xlu0 %v105
    %v107 = vpop.xlane.xlu0 %106
    %v108 = vsel %vm104, %v107, %v98
    %s109 = scalar_lea.vmem [#allocation2], 3
    %v110 = vld [vmem:[%s109] ss:$0 sm:$0xff]
    %v111 = vxor.u32 %v110, 2147483648
    %v112 = vlaneseq
    %v113 = vand.u32 %v112, 127
    %vm114 = vcmp.eq.s32.totalorder %v113, 3
    %v115 = vmul.f32 %v111, %v108
    %116 = vadd.xlane.f32.xlu0 %v115
    %v117 = vpop.xlane.xlu0 %116
    %v118 = vsel %vm114, %v117, %v108
    %s119 = scalar_lea.vmem [#allocation2], 4
    %v120 = vld [vmem:[%s119] ss:$0 sm:$0xff]
    %v121 = vxor.u32 %v120, 2147483648
    %v122 = vlaneseq
    %v123 = vand.u32 %v122, 127
    %vm124 = vcmp.eq.s32.totalorder %v123, 4
    %v125 = vmul.f32 %v121, %v118
    %126 = vadd.xlane.f32.xlu0 %v125
    %v127 = vpop.xlane.xlu0 %126
    %v128 = vsel %vm124, %v127, %v118
    %s129 = scalar_lea.vmem [#allocation2], 5
    %v130 = vld [vmem:[%s129] ss:$0 sm:$0xff]
    %v131 = vxor.u32 %v130, 2147483648
    %v132 = vlaneseq
    %v133 = vand.u32 %v132, 127
    %vm134 = vcmp.eq.s32.totalorder %v133, 5
    %v135 = vmul.f32 %v131, %v128
    %136 = vadd.xlane.f32.xlu0 %v135
    %v137 = vpop.xlane.xlu0 %136
    %v138 = vsel %vm134, %v137, %v128
    %s139 = scalar_lea.vmem [#allocation2], 6
    %v140 = vld [vmem:[%s139] ss:$0 sm:$0xff]
    %v141 = vxor.u32 %v140, 2147483648
    %v142 = vlaneseq
    %v143 = vand.u32 %v142, 127
    %vm144 = vcmp.eq.s32.totalorder %v143, 6
    %v145 = vmul.f32 %v141, %v138
    %146 = vadd.xlane.f32.xlu0 %v145
    %v147 = vpop.xlane.xlu0 %146
    %v148 = vsel %vm144, %v147, %v138
    %s149 = scalar_lea.vmem [#allocation2], 7
    %v150 = vld [vmem:[%s149] ss:$0 sm:$0xff]
    %v151 = vxor.u32 %v150, 2147483648
    %v152 = vlaneseq
    %v153 = vand.u32 %v152, 127
    %vm154 = vcmp.eq.s32.totalorder %v153, 7
    %v155 = vmul.f32 %v151, %v148
    %156 = vadd.xlane.f32.xlu0 %v155
    %v157 = vpop.xlane.xlu0 %156
    %v158 = vsel %vm154, %v157, %v148
    %s159 = scalar_lea.vmem [#allocation2], 8
    %v160 = vld [vmem:[%s159] ss:$0 sm:$0xff]
    %v161 = vxor.u32 %v160, 2147483648
    %v162 = vlaneseq
    %v163 = vand.u32 %v162, 127
    %vm164 = vcmp.eq.s32.totalorder %v163, 8
    %v165 = vmul.f32 %v161, %v158
    %166 = vadd.xlane.f32.xlu0 %v165
    %v167 = vpop.xlane.xlu0 %166
    %v168 = vsel %vm164, %v167, %v158
    %v169 = vmul.f32 %v161, %v88
    %170 = vadd.xlane.f32.xlu0 %v169
    %v171 = vpop.xlane.xlu0 %170
    %v172 = vsel %vm164, %v171, %v88
    %s173 = scalar_lea.vmem [#allocation2], 9
    %v174 = vld [vmem:[%s173] ss:$0 sm:$0xff]
    %v175 = vxor.u32 %v174, 2147483648
    %v176 = vlaneseq
    %v177 = vand.u32 %v176, 127
    %vm178 = vcmp.eq.s32.totalorder %v177, 9
    %v179 = vmul.f32 %v175, %v168
    %180 = vadd.xlane.f32.xlu0 %v179
    %v181 = vpop.xlane.xlu0 %180
    %v182 = vsel %vm178, %v181, %v168
    %v183 = vmul.f32 %v175, %v172
    %184 = vadd.xlane.f32.xlu0 %v183
    %v185 = vpop.xlane.xlu0 %184
    %v186 = vsel %vm178, %v185, %v172
    %s187 = scalar_lea.vmem [#allocation2], 10
    %v188 = vld [vmem:[%s187] ss:$0 sm:$0xff]
    %v189 = vxor.u32 %v188, 2147483648
    %v190 = vlaneseq
    %v191 = vand.u32 %v190, 127
    %vm192 = vcmp.eq.s32.totalorder %v191, 10
    %v193 = vmul.f32 %v189, %v182
    %194 = vadd.xlane.f32.xlu0 %v193
    %v195 = vpop.xlane.xlu0 %194
    %v196 = vsel %vm192, %v195, %v182
    %v197 = vmul.f32 %v189, %v186
    %198 = vadd.xlane.f32.xlu0 %v197
    %v199 = vpop.xlane.xlu0 %198
    %v200 = vsel %vm192, %v199, %v186
    %s201 = scalar_lea.vmem [#allocation2], 11
    %v202 = vld [vmem:[%s201] ss:$0 sm:$0xff]
    %v203 = vxor.u32 %v202, 2147483648
    %v204 = vlaneseq
    %v205 = vand.u32 %v204, 127
    %vm206 = vcmp.eq.s32.totalorder %v205, 11
    %v207 = vmul.f32 %v203, %v196
    %208 = vadd.xlane.f32.xlu0 %v207
    %v209 = vpop.xlane.xlu0 %208
    %v210 = vsel %vm206, %v209, %v196
    %v211 = vmul.f32 %v203, %v200
    %212 = vadd.xlane.f32.xlu0 %v211
    %v213 = vpop.xlane.xlu0 %212
    %v214 = vsel %vm206, %v213, %v200
    %s215 = scalar_lea.vmem [#allocation2], 12
    %v216 = vld [vmem:[%s215] ss:$0 sm:$0xff]
    %v217 = vxor.u32 %v216, 2147483648
    %v218 = vlaneseq
    %v219 = vand.u32 %v218, 127
    %vm220 = vcmp.eq.s32.totalorder %v219, 12
    %v221 = vmul.f32 %v217, %v210
    %222 = vadd.xlane.f32.xlu0 %v221
    %v223 = vpop.xlane.xlu0 %222
    %v224 = vsel %vm220, %v223, %v210
    %v225 = vmul.f32 %v217, %v214
    %226 = vadd.xlane.f32.xlu0 %v225
    %v227 = vpop.xlane.xlu0 %226
    %v228 = vsel %vm220, %v227, %v214
    %s229 = scalar_lea.vmem [#allocation2], 13
    %v230 = vld [vmem:[%s229] ss:$0 sm:$0xff]
    %v231 = vxor.u32 %v230, 2147483648
    %v232 = vlaneseq
    %v233 = vand.u32 %v232, 127
    %vm234 = vcmp.eq.s32.totalorder %v233, 13
    %v235 = vmul.f32 %v231, %v224
    %236 = vadd.xlane.f32.xlu0 %v235
    %v237 = vpop.xlane.xlu0 %236
    %v238 = vsel %vm234, %v237, %v224
    %v239 = vmul.f32 %v231, %v228
    %240 = vadd.xlane.f32.xlu0 %v239
    %v241 = vpop.xlane.xlu0 %240
    %v242 = vsel %vm234, %v241, %v228
    %s243 = scalar_lea.vmem [#allocation2], 14
    %v244 = vld [vmem:[%s243] ss:$0 sm:$0xff]
    %v245 = vxor.u32 %v244, 2147483648
    %v246 = vlaneseq
    %v247 = vand.u32 %v246, 127
    %vm248 = vcmp.eq.s32.totalorder %v247, 14
    %v249 = vmul.f32 %v245, %v238
    %250 = vadd.xlane.f32.xlu0 %v249
    %v251 = vpop.xlane.xlu0 %250
    %v252 = vsel %vm248, %v251, %v238
    %v253 = vmul.f32 %v245, %v242
    %254 = vadd.xlane.f32.xlu0 %v253
    %v255 = vpop.xlane.xlu0 %254
    %v256 = vsel %vm248, %v255, %v242
    %s257 = scalar_lea.vmem [#allocation2], 15
    %v258 = vld [vmem:[%s257] ss:$0 sm:$0xff]
    %v259 = vxor.u32 %v258, 2147483648
    %v260 = vlaneseq
    %v261 = vand.u32 %v260, 127
    %vm262 = vcmp.eq.s32.totalorder %v261, 15
    %v263 = vmul.f32 %v259, %v252
    %264 = vadd.xlane.f32.xlu0 %v263
    %v265 = vpop.xlane.xlu0 %264
    %v266 = vsel %vm262, %v265, %v252
    %v267 = vmul.f32 %v259, %v256
    %268 = vadd.xlane.f32.xlu0 %v267
    %v269 = vpop.xlane.xlu0 %268
    %v270 = vsel %vm262, %v269, %v256
    %v271 = vrcp.pop %v48
    %v272 = vmul.f32 %v266, %v271
    %vm273 = vweird.f32 %v48
    %v274 = vsel %vm273, %v266, %v272
    %275 = vst [vmem:[#allocation1] sm:$0xff] %v274
    %v276 = vrcp.pop %v64
    %v277 = vmul.f32 %v270, %v276
    %vm278 = vweird.f32 %v64
    %v279 = vsel %vm278, %v270, %v277
    %s280 = scalar_lea.vmem [#allocation1], 8
    %281 = vst [vmem:[%s280] sm:$0xff] %v279
    // Predicated region
    $region36: #{custom-call.9} parent=1 // pred_check
      _
    $region37: #{custom-call.9} parent=1 // pred_check_branch
      %283 = sbr.rel (0) target = $region39
    $region38: #{custom-call.9} parent=1 // pred_region
      // Predicated region
      $region40: #{custom-call.9} parent=38 // pred_check
        _
      $region41: #{custom-call.9} parent=38 // pred_check_branch
        %285 = sbr.rel (0) target = $region43
      $region42: #{custom-call.9} parent=38 // pred_region
        // Predicated region
        $region55: #{custom-call.9} parent=42 // pred_check
          _
        $region56: #{custom-call.9} parent=42 // pred_check_branch
          %302 = sbr.rel (0) target = $region58
        $region57: #{custom-call.9} parent=42 // pred_region
          loop: start=0, step=1, limit=1
          $region59: #{custom-call.9} parent=57 // loop_pre_header
            _
          $region60: #{custom-call.9} parent=57 // loop_header
            %s304 = sphi 0, %s308
            %p305 = scmp.ge.s32.totalorder %s304, 1
            %s309 = sphi [#allocation1], [#allocation1]
            %s310 = sphi %s1, %s1
          $region61: #{custom-call.9} parent=57 // loop_header_branch
            %307 = sbr.rel (%p305) target = $region65
          $region62: #{custom-call.9} parent=57 // loop_body
            %v311 = vld [vmem:[%s309] sm:$0xff]
            %312 = vst [vmem:[%s310] sm:$0xff] %v311
            %v313 = vld [vmem:[%s309 + $0x8] sm:$0xff]
            %314 = vst [vmem:[%s310 + $0x8] sm:$0xff] %v313
          $region63: #{custom-call.9} parent=57 // loop_footer
            %s308 = sadd.s32 1, %s304
          $region64: #{custom-call.9} parent=57 // loop_footer_branch
            %303 = sbr.rel target = $region60
          $region65: #{custom-call.9} parent=57 // loop_exit
            _
        $region58: #{custom-call.9} parent=42 // pred_fallthru
          _
        // Predicated region
        $region66: #{custom-call.9} parent=42 // pred_check
          _
        $region67: #{custom-call.9} parent=42 // pred_check_branch
          %316 = sbr.rel target = $region69
        $region68: #{custom-call.9} parent=42 // pred_region
          _
        $region69: #{custom-call.9} parent=42 // pred_fallthru
          _
      $region43: #{custom-call.9} parent=38 // pred_fallthru
        _
      // Predicated region
      $region44: #{custom-call.9} parent=38 // pred_check
        _
      $region45: #{custom-call.9} parent=38 // pred_check_branch
        %287 = sbr.rel target = $region47
      $region46: #{custom-call.9} parent=38 // pred_region
        loop: start=0, step=1, limit=1
        $region48: #{custom-call.9} parent=46 // loop_pre_header
          _
        $region49: #{custom-call.9} parent=46 // loop_header
          %s290 = sphi 0, %s294
          %p291 = scmp.ge.s32.totalorder %s290, 1
          %s295 = sphi [#allocation1], [#allocation1]
          %s296 = sphi %s1, %s1
        $region50: #{custom-call.9} parent=46 // loop_header_branch
          %293 = sbr.rel (%p291) target = $region54
        $region51: #{custom-call.9} parent=46 // loop_body
          %v297 = vld [vmem:[%s295] sm:$0xff]
          %298 = vst [vmem:[%s296] sm:$0xff] %v297
          %v299 = vld [vmem:[%s295 + $0x8] sm:$0xff]
          %300 = vst [vmem:[%s296 + $0x8] sm:$0xff] %v299
        $region52: #{custom-call.9} parent=46 // loop_footer
          %s294 = sadd.s32 1, %s290
        $region53: #{custom-call.9} parent=46 // loop_footer_branch
          %289 = sbr.rel target = $region49
        $region54: #{custom-call.9} parent=46 // loop_exit
          _
      $region47: #{custom-call.9} parent=38 // pred_fallthru
        _
    $region39: #{custom-call.9} parent=1 // pred_fallthru
      _
    %317 = vnop

// kernel: custom-call.11
$region0: #{custom-call.11}
  %s0 = inlined_call_operand.vmem [shape: f32[16,16], index: 0, kind: input, shape index: {}]
  %s1 = inlined_call_operand.vmem [shape: f32[16,16], index: 1, kind: output, shape index: {0}]
  %s2 = inlined_call_operand.hbm [shape: s32[16], index: 2, kind: output, shape index: {1}]
  %s3 = inlined_call_operand.hbm [shape: s32[16], index: 3, kind: output, shape index: {2}]
  %4 = xla_tuple %s1, %s2, %s3
  $region1: #{custom-call.11} parent=0
    #allocation0 [shape = 'u8[8192]{0}', space=vmem, size = 0x2000, scoped, tag = 'operand span for operand 0']
    #allocation1 [shape = 'u8[8192]{0}', space=vmem, size = 0x2000, scoped, tag = 'operand span for operand 1']
    #allocation2 [shape = 'u8[4096]{0}', space=vmem, size = 0x1000, scoped, tag = 'operand span for operand 2']
    #allocation3 [shape = 'u8[512]{0}', space=vmem, size = 0x400, scoped, tag = 'packed  for operand 2']
    #allocation4 [shape = 's32[1]{0}', space=sflag, size = 0x4, scoped, tag = 'scoped memory for custom-call.11']
    #allocation5 [shape = 'u8[4096]{0}', space=vmem, size = 0x1000, scoped, tag = 'operand span for operand 3']
    #allocation6 [shape = 'u8[512]{0}', space=vmem, size = 0x400, scoped, tag = 'packed  for operand 3']
    #allocation7 [shape = 's32[1]{0}', space=sflag, size = 0x4, scoped, tag = 'scoped memory for custom-call.11']
    #allocation8 [shape = 's32[16,128]{1,0}', space=vmem, size = 0x2000, scoped, tag = 'scratch for permutations']
    %5 = vsyncpa [#allocation4], 0
    %6 = vsyncpa [#allocation7], 0
    %p8 = scmp.gt.s32.totalorder 16, 0
    // Predicated region
    $region2: #{custom-call.11} parent=1 // pred_check
      %p9 = pneg %p8
    $region3: #{custom-call.11} parent=1 // pred_check_branch
      %11 = sbr.rel (%p9) target = $region5
    $region4: #{custom-call.11} parent=1 // pred_region
      %s12 = sshra.s32 16, 3
      %p13 = scmp.gt.s32.totalorder %s12, 0
      // Predicated region
      $region6: #{custom-call.11} parent=4 // pred_check
        %p14 = pneg %p13
      $region7: #{custom-call.11} parent=4 // pred_check_branch
        %16 = sbr.rel (%p14) target = $region9
      $region8: #{custom-call.11} parent=4 // pred_region
        %s17 = ssub.s32 %s12, 1
        %s18 = smul.u32 %s17, 128
        %s19 = sshra.s32 %s18, 4
        %s20 = scalar_lea.vmem %s0, %s19
        %v21 = vld [vmem:[%s0] sm:$0xff]
        // While loop
        $region10: #{custom-call.11} parent=8 // loop_pre_header
          _
        $region11: #{custom-call.11} parent=8 // loop_header
          %s22 = sphi %s0, %s44
          %s23 = sphi [#allocation0], %s45
          %v24 = vphi %v21, %v46
          %s25 = ssub.s32 %s20, 64
          %p26 = scmp.gt.s32.totalorder %s22, %s25
        $region12: #{custom-call.11} parent=8 // loop_header_branch
          %28 = sbr.rel (%p26) target = $region16
        $region13: #{custom-call.11} parent=8 // loop_body
          %29 = vst [vmem:[%s23] sm:$0xff] %v24
          %v30 = vld [vmem:[%s22 + $0x8] sm:$0xff]
          %31 = vst [vmem:[%s23 + $0x8] sm:$0xff] %v30
          %v32 = vld [vmem:[%s22 + $0x10] sm:$0xff]
          %33 = vst [vmem:[%s23 + $0x10] sm:$0xff] %v32
          %v34 = vld [vmem:[%s22 + $0x18] sm:$0xff]
          %35 = vst [vmem:[%s23 + $0x18] sm:$0xff] %v34
          %v36 = vld [vmem:[%s22 + $0x20] sm:$0xff]
          %37 = vst [vmem:[%s23 + $0x20] sm:$0xff] %v36
          %v38 = vld [vmem:[%s22 + $0x28] sm:$0xff]
          %39 = vst [vmem:[%s23 + $0x28] sm:$0xff] %v38
          %v40 = vld [vmem:[%s22 + $0x30] sm:$0xff]
          %41 = vst [vmem:[%s23 + $0x30] sm:$0xff] %v40
          %v42 = vld [vmem:[%s22 + $0x38] sm:$0xff]
          %43 = vst [vmem:[%s23 + $0x38] sm:$0xff] %v42
        $region14: #{custom-call.11} parent=8 // loop_footer
          %s44 = scalar_lea.vmem %s22, 64
          %s45 = scalar_lea.vmem %s23, 64
          %v46 = vld [vmem:[%s22 + $0x40] sm:$0xff]
        $region15: #{custom-call.11} parent=8 // loop_footer_branch
          %47 = sbr.rel target = $region11
        $region16: #{custom-call.11} parent=8 // loop_exit
          _
        // While loop
        $region17: #{custom-call.11} parent=8 // loop_pre_header
          _
        $region18: #{custom-call.11} parent=8 // loop_header
          %s48 = sphi %s22, %s56
          %s49 = sphi %s23, %s57
          %v50 = vphi %v24, %v50
          %p51 = scmp.gt.s32.totalorder %s48, %s20
        $region19: #{custom-call.11} parent=8 // loop_header_branch
          %53 = sbr.rel (%p51) target = $region23
        $region20: #{custom-call.11} parent=8 // loop_body
          %v54 = vld [vmem:[%s48] sm:$0xff]
          %55 = vst [vmem:[%s49] sm:$0xff] %v54
        $region21: #{custom-call.11} parent=8 // loop_footer
          %s56 = scalar_lea.vmem %s48, 8
          %s57 = scalar_lea.vmem %s49, 8
        $region22: #{custom-call.11} parent=8 // loop_footer_branch
          %58 = sbr.rel target = $region18
        $region23: #{custom-call.11} parent=8 // loop_exit
          _
      $region9: #{custom-call.11} parent=4 // pred_fallthru
        _
      %s59 = sand.u32 16, 7
      %s60 = sshllo.u32 0, %s59
      %s61 = smul.u32 %s12, 128
      %s62 = sshra.s32 %s61, 4
      %s63 = scalar_lea.vmem [#allocation0], %s62
      %s64 = smul.u32 %s12, 128
      %s65 = sshra.s32 %s64, 4
      %s66 = scalar_lea.vmem %s0, %s65
      %v67 = vld [vmem:[%s66] sm:%s60]
      %68 = vst [vmem:[%s63] sm:%s60] %v67
    $region5: #{custom-call.11} parent=1 // pred_fallthru
      _
    %v69 = vld [vmem:[#allocation0] sm:$0xff]
    %70 = vst [vmem:[#allocation1] sm:$0xff] %v69
    %s71 = scalar_lea.vmem [#allocation1], 8
    %s72 = scalar_lea.vmem [#allocation0], 8
    %v73 = vld [vmem:[%s72] sm:$0xff]
    %74 = vst [vmem:[%s71] sm:$0xff] %v73
    %75 = vst [vmem:[#allocation2] sm:$0x1] 0
    %v76 = vlaneseq
    %v77 = vshrl.u32 %v76, 7
    %v78 = vmov %v77
    loop: start=0, step=1, limit=2
    $region24: #{custom-call.11} parent=1 // loop_pre_header
      _
    $region25: #{custom-call.11} parent=1 // loop_header
      %s80 = sphi 0, %s84
      %p81 = scmp.ge.s32.totalorder %s80, 2
    $region26: #{custom-call.11} parent=1 // loop_header_branch
      %83 = sbr.rel (%p81) target = $region30
    $region27: #{custom-call.11} parent=1 // loop_body
      %s85 = smul.addr %s80, 8
      %s86 = scalar_lea.vmem [#allocation8], %s85
      %s87 = smul.u32 %s80, 8
      %v88 = vstv %s87
      %v89 = vadd.s32 %v78, %v88
      %90 = vst [vmem:[%s86] sm:$0xff] %v89
    $region28: #{custom-call.11} parent=1 // loop_footer
      %s84 = sadd.s32 1, %s80
    $region29: #{custom-call.11} parent=1 // loop_footer_branch
      %79 = sbr.rel target = $region25
    $region30: #{custom-call.11} parent=1 // loop_exit
      _
    loop: start=0, step=1, limit=16
    $region31: #{custom-call.11} parent=1 // loop_pre_header
      _
    $region32: #{custom-call.11} parent=1 // loop_header
      %s92 = sphi 0, %s96
      %p93 = scmp.ge.s32.totalorder %s92, 16
    $region33: #{custom-call.11} parent=1 // loop_header_branch
      %95 = sbr.rel (%p93) target = $region37
    $region34: #{custom-call.11} parent=1 // loop_body
      %v97 = vstv %s92
      %v98 = vlaneseq
      %v99 = vshrl.u32 %v98, 7
      %v100 = vmov %v99
      %v101 = vld [vmem:[#allocation1] sm:$0xff]
      %v102 = vand.u32 2147483647, %v101
      %v104 = vstv %s92
      %vm105 = vcmp.ge.s32.totalorder %v100, %v104
      %vm106 = vcmp.lt.s32.totalorder %v100, 16
      %vm107 = vmand %vm105, %vm106
      %vm108 = vcmp.lt.f32.partialorder -inf, %v102
      %vm109 = vmand %vm107, %vm108
      %v110 = vsel %vm109, %v100, %v97
      %v111 = vsel %vm109, %v102, -inf
      %s112 = scalar_lea.vmem [#allocation1], 8
      %v113 = vld [vmem:[%s112] sm:$0xff]
      %v114 = vand.u32 2147483647, %v113
      %v115 = vadd.s32 %v100, 8
      %v116 = vstv %s92
      %vm117 = vcmp.ge.s32.totalorder %v115, %v116
      %vm118 = vcmp.lt.s32.totalorder %v115, 16
      %vm119 = vmand %vm117, %vm118
      %vm120 = vcmp.lt.f32.partialorder %v111, %v114
      %vm121 = vmand %vm119, %vm120
      %v122 = vsel %vm121, %v115, %v110
      %v123 = vsel %vm121, %v114, %v111
      %v124 = vrot.slane %v123, 1
      %v125 = vrot.slane %v122, 1
      %vm126 = vcmp.ge.f32.partialorder %v124, %v123
      %v127 = vsel %vm126, %v124, %v123
      %v128 = vsel %vm126, %v125, %v122
      %v129 = vrot.slane %v124, 1
      %v130 = vrot.slane %v125, 1
      %vm131 = vcmp.ge.f32.partialorder %v129, %v127
      %v132 = vsel %vm131, %v129, %v127
      %v133 = vsel %vm131, %v130, %v128
      %v134 = vrot.slane %v129, 1
      %v135 = vrot.slane %v130, 1
      %vm136 = vcmp.ge.f32.partialorder %v134, %v132
      %v137 = vsel %vm136, %v134, %v132
      %v138 = vsel %vm136, %v135, %v133
      %v139 = vrot.slane %v134, 1
      %v140 = vrot.slane %v135, 1
      %vm141 = vcmp.ge.f32.partialorder %v139, %v137
      %v142 = vsel %vm141, %v139, %v137
      %v143 = vsel %vm141, %v140, %v138
      %v144 = vrot.slane %v139, 1
      %v145 = vrot.slane %v140, 1
      %vm146 = vcmp.ge.f32.partialorder %v144, %v142
      %v147 = vsel %vm146, %v144, %v142
      %v148 = vsel %vm146, %v145, %v143
      %v149 = vrot.slane %v144, 1
      %v150 = vrot.slane %v145, 1
      %vm151 = vcmp.ge.f32.partialorder %v149, %v147
      %v152 = vsel %vm151, %v149, %v147
      %v153 = vsel %vm151, %v150, %v148
      %v154 = vrot.slane %v149, 1
      %v155 = vrot.slane %v150, 1
      %vm156 = vcmp.ge.f32.partialorder %v154, %v152
      %v157 = vsel %vm156, %v154, %v152
      %v158 = vsel %vm156, %v155, %v153
      %s159 = ssub.s32 128, %s92
      %160 = vrot.lane.b32.xlu0 %v158, %s159
      %v161 = vpop.permute.xlu0 %160
      %s162 = vtos %v161
      %v163 = vstv %s92
      %v164 = vlaneseq
      %v165 = vand.u32 %v164, 127
      %vm166 = vcmp.eq.s32.totalorder %v165, %v163
      %v167 = vstv %s162
      %v168 = vld [vmem:[#allocation2] ss:$0 sm:$0xff]
      %v169 = vsel %vm166, %v167, %v168
      %170 = vst [vmem:[#allocation2] sm:$0x1] %v169
      %s171 = scalar_lea.vmem [#allocation1], %s92
      %s172 = scalar_lea.vmem [#allocation1], %s162
      %v173 = vld [vmem:[%s171] ss:$0 sm:$0xff]
      %v174 = vld [vmem:[%s172] ss:$0 sm:$0xff]
      %175 = vst [vmem:[%s172] sm:$0x1] %v173
      %176 = vst [vmem:[%s171] sm:$0x1] %v174
      %s177 = scalar_lea.vmem [#allocation8], %s92
      %s178 = scalar_lea.vmem [#allocation8], %s162
      %v179 = vld [vmem:[%s177] ss:$0 sm:$0xff]
      %v180 = vld [vmem:[%s178] ss:$0 sm:$0xff]
      %181 = vst [vmem:[%s178] sm:$0x1] %v179
      %182 = vst [vmem:[%s177] sm:$0x1] %v180
      %vm183 = vcmp.ne.f32.partialorder %v174, 0.0
      %vm184 = vmand %vm166, %vm183
      %v185 = vsel %vm184, %v174, 1.0
      %v186 = vlaneseq
      %v187 = vand.u32 %v186, 127
      %v188 = vstv %s92
      %vm189 = vcmp.gt.s32.totalorder %v187, %v188
      %v190 = vsel %vm189, %v174, 0.0
      %v191 = vlaneseq
      %v192 = vshrl.u32 %v191, 7
      %v193 = vmov %v192
      %v194 = vld [vmem:[#allocation1] sm:$0xff]
      %v196 = vstv %s92
      %vm197 = vcmp.gt.s32.totalorder %v193, %v196
      %v198 = vsel %vm197, %v185, 1.0
      %v199 = vrcp.pop %v198
      %v200 = vmul.f32 %v194, %v199
      %vm201 = vmand %vm197, %vm166
      %v202 = vsel %vm201, %v200, 0.0
      %203 = vadd.xlane.f32.xlu0 %v202
      %v204 = vpop.xlane.xlu0 %203
      %v205 = vmul.f32 %v204, %v190
      %v206 = vsub.f32 %v200, %v205
      %207 = vst [vmem:[#allocation1] sm:$0xff] %v206
      %s208 = scalar_lea.vmem [#allocation1], 8
      %v209 = vld [vmem:[%s208] sm:$0xff]
      %v210 = vadd.s32 %v193, 8
      %v211 = vstv %s92
      %vm212 = vcmp.gt.s32.totalorder %v210, %v211
      %v213 = vsel %vm212, %v185, 1.0
      %v214 = vrcp.pop %v213
      %v215 = vmul.f32 %v209, %v214
      %vm216 = vmand %vm212, %vm166
      %v217 = vsel %vm216, %v215, 0.0
      %218 = vadd.xlane.f32.xlu0 %v217
      %v219 = vpop.xlane.xlu0 %218
      %v220 = vmul.f32 %v219, %v190
      %v221 = vsub.f32 %v215, %v220
      %222 = vst [vmem:[%s208] sm:$0xff] %v221
    $region35: #{custom-call.11} parent=1 // loop_footer
      %s96 = sadd.s32 1, %s92
    $region36: #{custom-call.11} parent=1 // loop_footer_branch
      %91 = sbr.rel target = $region32
    $region37: #{custom-call.11} parent=1 // loop_exit
      _
    %v223 = vld [vmem:[#allocation8] sm:$0xff]
    %s224 = scalar_lea.vmem [#allocation8], 8
    %v225 = vld [vmem:[%s224] sm:$0xff]
    %s226 = scalar_lea.vmem [#allocation8], 16
    %s227 = scalar_lea.vmem [#allocation8], 24
    %s228 = scalar_lea.vmem [#allocation8], 32
    %s229 = scalar_lea.vmem [#allocation8], 40
    %s230 = scalar_lea.vmem [#allocation8], 48
    %s231 = scalar_lea.vmem [#allocation8], 56
    %s232 = scalar_lea.vmem [#allocation8], 64
    %s233 = scalar_lea.vmem [#allocation8], 72
    %s234 = scalar_lea.vmem [#allocation8], 80
    %s235 = scalar_lea.vmem [#allocation8], 88
    %s236 = scalar_lea.vmem [#allocation8], 96
    %s237 = scalar_lea.vmem [#allocation8], 104
    %s238 = scalar_lea.vmem [#allocation8], 112
    %s239 = scalar_lea.vmem [#allocation8], 120
    %240 = vxpose.xlu0.b32.start [1/16] %v223, 128
    %241 = vxpose.xlu0.b32.cont [2/16] %v225, 128
    %242 = vxpose.xlu0.b32.cont [3/16] 0, 128
    %243 = vxpose.xlu0.b32.cont [4/16] 0, 128
    %244 = vxpose.xlu0.b32.cont [5/16] 0, 128
    %245 = vxpose.xlu0.b32.cont [6/16] 0, 128
    %246 = vxpose.xlu0.b32.cont [7/16] 0, 128
    %247 = vxpose.xlu0.b32.cont [8/16] 0, 128
    %248 = vxpose.xlu0.b32.cont [9/16] 0, 128
    %249 = vxpose.xlu0.b32.cont [10/16] 0, 128
    %250 = vxpose.xlu0.b32.cont [11/16] 0, 128
    %251 = vxpose.xlu0.b32.cont [12/16] 0, 128
    %252 = vxpose.xlu0.b32.cont [13/16] 0, 128
    %253 = vxpose.xlu0.b32.cont [14/16] 0, 128
    %254 = vxpose.xlu0.b32.cont [15/16] 0, 128
    %255 = vxpose.xlu0.b32.end [16/16] 0, 128
    %v256 = vpop.trf.xlu0
    %v257 = vpop.trf.xlu0
    %v258 = vpop.trf.xlu0
    %v259 = vpop.trf.xlu0
    %v260 = vpop.trf.xlu0
    %v261 = vpop.trf.xlu0
    %v262 = vpop.trf.xlu0
    %v263 = vpop.trf.xlu0
    %v264 = vpop.trf.xlu0
    %v265 = vpop.trf.xlu0
    %v266 = vpop.trf.xlu0
    %v267 = vpop.trf.xlu0
    %v268 = vpop.trf.xlu0
    %v269 = vpop.trf.xlu0
    %v270 = vpop.trf.xlu0
    %v271 = vpop.trf.xlu0
    %272 = vst [vmem:[#allocation5] sm:$0x1] %v256
    %s274 = sshllo.u32 0, 1
    %v276 = vld [vmem:[#allocation2] sm:%s274]
    %s277 = sshllo.u32 0, 1
    %278 = vst [vmem:[#allocation3] sm:%s277] %v276
    %s280 = sshllo.u32 0, 1
    %v282 = vld [vmem:[#allocation5] sm:%s280]
    %s283 = sshllo.u32 0, 1
    %284 = vst [vmem:[#allocation6] sm:%s283] %v282
    %p286 = scmp.gt.s32.totalorder 16, 0
    // Predicated region
    $region38: #{custom-call.11} parent=1 // pred_check
      %p287 = pneg %p286
    $region39: #{custom-call.11} parent=1 // pred_check_branch
      %289 = sbr.rel (%p287) target = $region41
    $region40: #{custom-call.11} parent=1 // pred_region
      %s290 = sshra.s32 16, 3
      %p291 = scmp.gt.s32.totalorder %s290, 0
      // Predicated region
      $region42: #{custom-call.11} parent=40 // pred_check
        %p292 = pneg %p291
      $region43: #{custom-call.11} parent=40 // pred_check_branch
        %294 = sbr.rel (%p292) target = $region45
      $region44: #{custom-call.11} parent=40 // pred_region
        %s295 = ssub.s32 %s290, 1
        %s296 = smul.u32 %s295, 128
        %s297 = sshra.s32 %s296, 4
        %s298 = scalar_lea.vmem [#allocation1], %s297
        %v299 = vld [vmem:[#allocation1] sm:$0xff]
        // While loop
        $region46: #{custom-call.11} parent=44 // loop_pre_header
          _
        $region47: #{custom-call.11} parent=44 // loop_header
          %s300 = sphi [#allocation1], %s322
          %s301 = sphi %s1, %s323
          %v302 = vphi %v299, %v324
          %s303 = ssub.s32 %s298, 64
          %p304 = scmp.gt.s32.totalorder %s300, %s303
        $region48: #{custom-call.11} parent=44 // loop_header_branch
          %306 = sbr.rel (%p304) target = $region52
        $region49: #{custom-call.11} parent=44 // loop_body
          %307 = vst [vmem:[%s301] sm:$0xff] %v302
          %v308 = vld [vmem:[%s300 + $0x8] sm:$0xff]
          %309 = vst [vmem:[%s301 + $0x8] sm:$0xff] %v308
          %v310 = vld [vmem:[%s300 + $0x10] sm:$0xff]
          %311 = vst [vmem:[%s301 + $0x10] sm:$0xff] %v310
          %v312 = vld [vmem:[%s300 + $0x18] sm:$0xff]
          %313 = vst [vmem:[%s301 + $0x18] sm:$0xff] %v312
          %v314 = vld [vmem:[%s300 + $0x20] sm:$0xff]
          %315 = vst [vmem:[%s301 + $0x20] sm:$0xff] %v314
          %v316 = vld [vmem:[%s300 + $0x28] sm:$0xff]
          %317 = vst [vmem:[%s301 + $0x28] sm:$0xff] %v316
          %v318 = vld [vmem:[%s300 + $0x30] sm:$0xff]
          %319 = vst [vmem:[%s301 + $0x30] sm:$0xff] %v318
          %v320 = vld [vmem:[%s300 + $0x38] sm:$0xff]
          %321 = vst [vmem:[%s301 + $0x38] sm:$0xff] %v320
        $region50: #{custom-call.11} parent=44 // loop_footer
          %s322 = scalar_lea.vmem %s300, 64
          %s323 = scalar_lea.vmem %s301, 64
          %v324 = vld [vmem:[%s300 + $0x40] sm:$0xff]
        $region51: #{custom-call.11} parent=44 // loop_footer_branch
          %325 = sbr.rel target = $region47
        $region52: #{custom-call.11} parent=44 // loop_exit
          _
        // While loop
        $region53: #{custom-call.11} parent=44 // loop_pre_header
          _
        $region54: #{custom-call.11} parent=44 // loop_header
          %s326 = sphi %s300, %s334
          %s327 = sphi %s301, %s335
          %v328 = vphi %v302, %v328
          %p329 = scmp.gt.s32.totalorder %s326, %s298
        $region55: #{custom-call.11} parent=44 // loop_header_branch
          %331 = sbr.rel (%p329) target = $region59
        $region56: #{custom-call.11} parent=44 // loop_body
          %v332 = vld [vmem:[%s326] sm:$0xff]
          %333 = vst [vmem:[%s327] sm:$0xff] %v332
        $region57: #{custom-call.11} parent=44 // loop_footer
          %s334 = scalar_lea.vmem %s326, 8
          %s335 = scalar_lea.vmem %s327, 8
        $region58: #{custom-call.11} parent=44 // loop_footer_branch
          %336 = sbr.rel target = $region54
        $region59: #{custom-call.11} parent=44 // loop_exit
          _
      $region45: #{custom-call.11} parent=40 // pred_fallthru
        _
      %s337 = sand.u32 16, 7
      %s338 = sshllo.u32 0, %s337
      %s339 = smul.u32 %s290, 128
      %s340 = sshra.s32 %s339, 4
      %s341 = scalar_lea.vmem %s1, %s340
      %s342 = smul.u32 %s290, 128
      %s343 = sshra.s32 %s342, 4
      %s344 = scalar_lea.vmem [#allocation1], %s343
      %v345 = vld [vmem:[%s344] sm:%s338]
      %346 = vst [vmem:[%s341] sm:%s338] %v345
    $region41: #{custom-call.11} parent=1 // pred_fallthru
      _
    // Predicated region
    $region60: #{custom-call.11} parent=1 // pred_check
      _
    $region61: #{custom-call.11} parent=1 // pred_check_branch
      %348 = sbr.rel (0) target = $region63
    $region62: #{custom-call.11} parent=1 // pred_region
      %s350 = ssub.s32 16, 16
      %351 = vsyncadd [#allocation4], %s350
      %s352 = sshll.u32 [#allocation3], 4
      %s353 = int_to_ptr.vmem [resolvable:$true] %s352
      %355 = dma.vmem_to_hbm [thread:$0]  %s353, 16, %s2, [#allocation4]
    $region63: #{custom-call.11} parent=1 // pred_fallthru
      _
    // Predicated region
    $region64: #{custom-call.11} parent=1 // pred_check
      _
    $region65: #{custom-call.11} parent=1 // pred_check_branch
      %357 = sbr.rel (0) target = $region67
    $region66: #{custom-call.11} parent=1 // pred_region
      %s359 = ssub.s32 16, 16
      %360 = vsyncadd [#allocation7], %s359
      %s361 = sshll.u32 [#allocation6], 4
      %s362 = int_to_ptr.vmem [resolvable:$true] %s361
      %364 = dma.vmem_to_hbm [thread:$0]  %s362, 16, %s3, [#allocation7]
    $region67: #{custom-call.11} parent=1 // pred_fallthru
      _
    // Predicated region
    $region68: #{custom-call.11} parent=1 // pred_check
      _
    $region69: #{custom-call.11} parent=1 // pred_check_branch
      %366 = sbr.rel (0) target = $region71
    $region70: #{custom-call.11} parent=1 // pred_region
      %367 = dma.done [#allocation4], 16
    $region71: #{custom-call.11} parent=1 // pred_fallthru
      _
    // Predicated region
    $region72: #{custom-call.11} parent=1 // pred_check
      _
    $region73: #{custom-call.11} parent=1 // pred_check_branch
      %369 = sbr.rel (0) target = $region75
    $region74: #{custom-call.11} parent=1 // pred_region
      %370 = dma.done [#allocation7], 16
    $region75: #{custom-call.11} parent=1 // pred_fallthru
      _
    %371 = vsyncpa [#allocation4], 1
    %372 = vsyncpa [#allocation7], 1

// kernel: gram_layer_forward.1
$region0: #{gram_layer_forward.1}
  #allocation0 [shape = 'u32[]', space=smem, size = 0x4, offset = 0x4, fixed_abs, tag = 'smem constant byte address 0x4 - core index']
  #allocation1 [shape = 'u32[144,128]{1,0:T(1,128)}', space=vmem, size = 0x12000, scoped, tag = 'internal scratch']
  %s0 = inlined_call_operand.vmem [shape: f32[128,16], index: 0, kind: input, shape index: {}]
  %s1 = inlined_call_operand.vmem [shape: f32[128,1], index: 1, kind: input, shape index: {}]
  %s2 = inlined_call_operand.vmem [shape: f32[16,16], index: 2, kind: input, shape index: {}]
  %s3 = inlined_call_operand.vmem [shape: f32[16,16], index: 3, kind: input, shape index: {}]
  %s4 = inlined_call_operand.vmem [shape: f32[128,16], index: 4, kind: output, shape index: {0}]
  %s5 = inlined_call_operand.vmem [shape: f32[128,1], index: 5, kind: output, shape index: {1}]
  %6 = xla_tuple %s4, %s5
  %s7 = sld [smem:[#allocation0]]
  $region34: #{gram_layer_forward.1} parent=0
    _
  %s9 = ssub.s32 1, %s7
  %s10 = scalar_select 0, %s9, %s7
  // Predicated region
  $region2: #{gram_layer_forward.1} parent=0 // pred_check
    _
  $region3: #{gram_layer_forward.1} parent=0 // pred_check_branch
    %12 = sbr.rel (0) target = $region5
  $region4: #{gram_layer_forward.1} parent=0 // pred_region
    _
  $region5: #{gram_layer_forward.1} parent=0 // pred_fallthru
    _
  // Predicated region
  $region6: #{gram_layer_forward.1} parent=0 // pred_check
    _
  $region7: #{gram_layer_forward.1} parent=0 // pred_check_branch
    %14 = sbr.rel (0) target = $region9
  $region8: #{gram_layer_forward.1} parent=0 // pred_region
    _
  $region9: #{gram_layer_forward.1} parent=0 // pred_fallthru
    _
  // Predicated region
  $region10: #{gram_layer_forward.1} parent=0 // pred_check
    _
  $region11: #{gram_layer_forward.1} parent=0 // pred_check_branch
    %16 = sbr.rel (0) target = $region13
  $region12: #{gram_layer_forward.1} parent=0 // pred_region
    _
  $region13: #{gram_layer_forward.1} parent=0 // pred_fallthru
    _
  // Predicated region
  $region14: #{gram_layer_forward.1} parent=0 // pred_check
    _
  $region15: #{gram_layer_forward.1} parent=0 // pred_check_branch
    %18 = sbr.rel (0) target = $region17
  $region16: #{gram_layer_forward.1} parent=0 // pred_region
    _
  $region17: #{gram_layer_forward.1} parent=0 // pred_fallthru
    _
  %v19 = vld [vmem:[%s0] sm:$0xff]
  %v20 = vld [vmem:[%s0 + $0x8] sm:$0xff]
  %v21 = vld [vmem:[%s0 + $0x10] sm:$0xff]
  %v22 = vld [vmem:[%s0 + $0x18] sm:$0xff]
  %v23 = vld [vmem:[%s0 + $0x20] sm:$0xff]
  %v24 = vld [vmem:[%s0 + $0x28] sm:$0xff]
  %v25 = vld [vmem:[%s0 + $0x30] sm:$0xff]
  %v26 = vld [vmem:[%s0 + $0x38] sm:$0xff]
  %v27 = vld [vmem:[%s0 + $0x40] sm:$0xff]
  %v28 = vld [vmem:[%s0 + $0x48] sm:$0xff]
  %v29 = vld [vmem:[%s0 + $0x50] sm:$0xff]
  %v30 = vld [vmem:[%s0 + $0x58] sm:$0xff]
  %v31 = vld [vmem:[%s0 + $0x60] sm:$0xff]
  %v32 = vld [vmem:[%s0 + $0x68] sm:$0xff]
  %v33 = vld [vmem:[%s0 + $0x70] sm:$0xff]
  %v34 = vld [vmem:[%s0 + $0x78] sm:$0xff]
  %v35 = vld [vmem:[%s2] sm:$0xff]
  %v36 = vld [vmem:[%s2 + $0x8] sm:$0xff]
  %vm37 = vcmask 130048
  %v39 = vsel %vm37, %v19, 0
  %v42 = vsel %vm37, %v20, 0
  %v45 = vsel %vm37, %v21, 0
  %v48 = vsel %vm37, %v22, 0
  %v51 = vsel %vm37, %v23, 0
  %v54 = vsel %vm37, %v24, 0
  %v57 = vsel %vm37, %v25, 0
  %v60 = vsel %vm37, %v26, 0
  %v63 = vsel %vm37, %v27, 0
  %v66 = vsel %vm37, %v28, 0
  %v69 = vsel %vm37, %v29, 0
  %v72 = vsel %vm37, %v30, 0
  %v75 = vsel %vm37, %v31, 0
  %v78 = vsel %vm37, %v32, 0
  %v81 = vsel %vm37, %v33, 0
  %v84 = vsel %vm37, %v34, 0
  %86 = vmatprep.subr.mxu0 0.0
  %87 = vmatpush1.msra.mxu0 %v35
  %88 = vmatprep.subr.mxu0 0.0
  %89 = vmatpush1.msra.mxu0 %v36
  %90 = vmatprep.subr.mxu0 0.0
  %91 = vmatpush1.msra.mxu0 0.0
  %92 = vmatprep.subr.mxu0 0.0
  %93 = vmatpush1.msra.mxu0 0.0
  %94 = vmatprep.subr.mxu0 0.0
  %95 = vmatpush1.msra.mxu0 0.0
  %96 = vmatprep.subr.mxu0 0.0
  %97 = vmatpush1.msra.mxu0 0.0
  %98 = vmatprep.subr.mxu0 0.0
  %99 = vmatpush1.msra.mxu0 0.0
  %100 = vmatprep.subr.mxu0 0.0
  %101 = vmatpush1.msra.mxu0 0.0
  %102 = vmatprep.subr.mxu0 0.0
  %103 = vmatpush1.msra.mxu0 0.0
  %104 = vmatprep.subr.mxu0 0.0
  %105 = vmatpush1.msra.mxu0 0.0
  %106 = vmatprep.subr.mxu0 0.0
  %107 = vmatpush1.msra.mxu0 0.0
  %108 = vmatprep.subr.mxu0 0.0
  %109 = vmatpush1.msra.mxu0 0.0
  %110 = vmatprep.subr.mxu0 0.0
  %111 = vmatpush1.msra.mxu0 0.0
  %112 = vmatprep.subr.mxu0 0.0
  %113 = vmatpush1.msra.mxu0 0.0
  %114 = vmatprep.subr.mxu0 0.0
  %115 = vmatpush1.msra.mxu0 0.0
  %116 = vmatprep.subr.mxu0 0.0
  %117 = vmatpush1.msra.mxu0 0.0
  %118 = vmatprep.subr.mxu0 0.0
  %119 = vmatpush1.msra.mxu0 0.0
  %120 = vmatprep.subr.mxu0 0.0
  %121 = vmatpush1.msra.mxu0 0.0
  %122 = vmatprep.subr.mxu0 0.0
  %123 = vmatpush1.msra.mxu0 0.0
  %124 = vmatprep.subr.mxu0 0.0
  %125 = vmatpush1.msra.mxu0 0.0
  %126 = vmatprep.subr.mxu0 0.0
  %127 = vmatpush1.msra.mxu0 0.0
  %128 = vmatprep.subr.mxu0 0.0
  %129 = vmatpush1.msra.mxu0 0.0
  %130 = vmatprep.subr.mxu0 0.0
  %131 = vmatpush1.msra.mxu0 0.0
  %132 = vmatprep.subr.mxu0 0.0
  %133 = vmatpush1.msra.mxu0 0.0
  %134 = vmatprep.subr.mxu0 0.0
  %135 = vmatpush1.msra.mxu0 0.0
  %136 = vmatprep.subr.mxu0 0.0
  %137 = vmatpush1.msra.mxu0 0.0
  %138 = vmatprep.subr.mxu0 0.0
  %139 = vmatpush1.msra.mxu0 0.0
  %140 = vmatprep.subr.mxu0 0.0
  %141 = vmatpush1.msra.mxu0 0.0
  %142 = vmatprep.subr.mxu0 0.0
  %143 = vmatpush1.msra.mxu0 0.0
  %144 = vmatprep.subr.mxu0 0.0
  %145 = vmatpush1.msra.mxu0 0.0
  %146 = vmatprep.subr.mxu0 0.0
  %147 = vmatpush1.msra.mxu0 0.0
  %148 = vmatprep.subr.mxu0 0.0
  %149 = vmatpush1.msra.mxu0 0.0
  %150 = vmatprep.mubr.f32.mxu0 0.0
  %151 = vmatmul.mubr.f32.gmra.mrb[0].mxu0 %v39
  %v152 = vpop.f32.mrb[0].mxu0
  %v153 = vadd.f32 0.0, %v152
  %v154 = vpop.f32.mrb[0].mxu0
  %155 = vmatprep.mubr.f32.mxu0 0.0
  %156 = vmatmul.mubr.f32.gmra.mrb[0].mxu0 %v42
  %v157 = vpop.f32.mrb[0].mxu0
  %v158 = vadd.f32 0.0, %v157
  %v159 = vpop.f32.mrb[0].mxu0
  %160 = vmatprep.mubr.f32.mxu0 0.0
  %161 = vmatmul.mubr.f32.gmra.mrb[0].mxu0 %v45
  %v162 = vpop.f32.mrb[0].mxu0
  %v163 = vadd.f32 0.0, %v162
  %v164 = vpop.f32.mrb[0].mxu0
  %165 = vmatprep.mubr.f32.mxu0 0.0
  %166 = vmatmul.mubr.f32.gmra.mrb[0].mxu0 %v48
  %v167 = vpop.f32.mrb[0].mxu0
  %v168 = vadd.f32 0.0, %v167
  %v169 = vpop.f32.mrb[0].mxu0
  %170 = vmatprep.mubr.f32.mxu0 0.0
  %171 = vmatmul.mubr.f32.gmra.mrb[0].mxu0 %v51
  %v172 = vpop.f32.mrb[0].mxu0
  %v173 = vadd.f32 0.0, %v172
  %v174 = vpop.f32.mrb[0].mxu0
  %175 = vmatprep.mubr.f32.mxu0 0.0
  %176 = vmatmul.mubr.f32.gmra.mrb[0].mxu0 %v54
  %v177 = vpop.f32.mrb[0].mxu0
  %v178 = vadd.f32 0.0, %v177
  %v179 = vpop.f32.mrb[0].mxu0
  %180 = vmatprep.mubr.f32.mxu0 0.0
  %181 = vmatmul.mubr.f32.gmra.mrb[0].mxu0 %v57
  %v182 = vpop.f32.mrb[0].mxu0
  %v183 = vadd.f32 0.0, %v182
  %v184 = vpop.f32.mrb[0].mxu0
  %185 = vmatprep.mubr.f32.mxu0 0.0
  %186 = vmatmul.mubr.f32.gmra.mrb[0].mxu0 %v60
  %v187 = vpop.f32.mrb[0].mxu0
  %v188 = vadd.f32 0.0, %v187
  %v189 = vpop.f32.mrb[0].mxu0
  %190 = vmatprep.mubr.f32.mxu0 0.0
  %191 = vmatmul.mubr.f32.gmra.mrb[0].mxu0 %v63
  %v192 = vpop.f32.mrb[0].mxu0
  %v193 = vadd.f32 0.0, %v192
  %v194 = vpop.f32.mrb[0].mxu0
  %195 = vmatprep.mubr.f32.mxu0 0.0
  %196 = vmatmul.mubr.f32.gmra.mrb[0].mxu0 %v66
  %v197 = vpop.f32.mrb[0].mxu0
  %v198 = vadd.f32 0.0, %v197
  %v199 = vpop.f32.mrb[0].mxu0
  %200 = vmatprep.mubr.f32.mxu0 0.0
  %201 = vmatmul.mubr.f32.gmra.mrb[0].mxu0 %v69
  %v202 = vpop.f32.mrb[0].mxu0
  %v203 = vadd.f32 0.0, %v202
  %v204 = vpop.f32.mrb[0].mxu0
  %205 = vmatprep.mubr.f32.mxu0 0.0
  %206 = vmatmul.mubr.f32.gmra.mrb[0].mxu0 %v72
  %v207 = vpop.f32.mrb[0].mxu0
  %v208 = vadd.f32 0.0, %v207
  %v209 = vpop.f32.mrb[0].mxu0
  %210 = vmatprep.mubr.f32.mxu0 0.0
  %211 = vmatmul.mubr.f32.gmra.mrb[0].mxu0 %v75
  %v212 = vpop.f32.mrb[0].mxu0
  %v213 = vadd.f32 0.0, %v212
  %v214 = vpop.f32.mrb[0].mxu0
  %215 = vmatprep.mubr.f32.mxu0 0.0
  %216 = vmatmul.mubr.f32.gmra.mrb[0].mxu0 %v78
  %v217 = vpop.f32.mrb[0].mxu0
  %v218 = vadd.f32 0.0, %v217
  %v219 = vpop.f32.mrb[0].mxu0
  %220 = vmatprep.mubr.f32.mxu0 0.0
  %221 = vmatmul.mubr.f32.gmra.mrb[0].mxu0 %v81
  %v222 = vpop.f32.mrb[0].mxu0
  %v223 = vadd.f32 0.0, %v222
  %v224 = vpop.f32.mrb[0].mxu0
  %225 = vmatprep.mubr.f32.mxu0 0.0
  %226 = vmatmul.mubr.f32.gmra.mrb[0].mxu0 %v84
  %v227 = vpop.f32.mrb[0].mxu0
  %v228 = vadd.f32 0.0, %v227
  %v229 = vpop.f32.mrb[0].mxu0
  %230 = vdwg.mxu0
  %v231 = vld [vmem:[%s3] sm:$0xff]
  %v232 = vld [vmem:[%s3 + $0x8] sm:$0xff]
  %v234 = vsel %vm37, %v153, 0
  %v237 = vsel %vm37, %v158, 0
  %v240 = vsel %vm37, %v163, 0
  %v243 = vsel %vm37, %v168, 0
  %v246 = vsel %vm37, %v173, 0
  %v249 = vsel %vm37, %v178, 0
  %v252 = vsel %vm37, %v183, 0
  %v255 = vsel %vm37, %v188, 0
  %v258 = vsel %vm37, %v193, 0
  %v261 = vsel %vm37, %v198, 0
  %v264 = vsel %vm37, %v203, 0
  %v267 = vsel %vm37, %v208, 0
  %v270 = vsel %vm37, %v213, 0
  %v273 = vsel %vm37, %v218, 0
  %v276 = vsel %vm37, %v223, 0
  %v279 = vsel %vm37, %v228, 0
  %281 = vmatprep.subr.mxu0 0.0
  %282 = vmatpush1.msra.mxu0 %v231
  %283 = vmatprep.subr.mxu0 0.0
  %284 = vmatpush1.msra.mxu0 %v232
  %285 = vmatprep.subr.mxu0 0.0
  %286 = vmatpush1.msra.mxu0 0.0
  %287 = vmatprep.subr.mxu0 0.0
  %288 = vmatpush1.msra.mxu0 0.0
  %289 = vmatprep.subr.mxu0 0.0
  %290 = vmatpush1.msra.mxu0 0.0
  %291 = vmatprep.subr.mxu0 0.0
  %292 = vmatpush1.msra.mxu0 0.0
  %293 = vmatprep.subr.mxu0 0.0
  %294 = vmatpush1.msra.mxu0 0.0
  %295 = vmatprep.subr.mxu0 0.0
  %296 = vmatpush1.msra.mxu0 0.0
  %297 = vmatprep.subr.mxu0 0.0
  %298 = vmatpush1.msra.mxu0 0.0
  %299 = vmatprep.subr.mxu0 0.0
  %300 = vmatpush1.msra.mxu0 0.0
  %301 = vmatprep.subr.mxu0 0.0
  %302 = vmatpush1.msra.mxu0 0.0
  %303 = vmatprep.subr.mxu0 0.0
  %304 = vmatpush1.msra.mxu0 0.0
  %305 = vmatprep.subr.mxu0 0.0
  %306 = vmatpush1.msra.mxu0 0.0
  %307 = vmatprep.subr.mxu0 0.0
  %308 = vmatpush1.msra.mxu0 0.0
  %309 = vmatprep.subr.mxu0 0.0
  %310 = vmatpush1.msra.mxu0 0.0
  %311 = vmatprep.subr.mxu0 0.0
  %312 = vmatpush1.msra.mxu0 0.0
  %313 = vmatprep.subr.mxu0 0.0
  %314 = vmatpush1.msra.mxu0 0.0
  %315 = vmatprep.subr.mxu0 0.0
  %316 = vmatpush1.msra.mxu0 0.0
  %317 = vmatprep.subr.mxu0 0.0
  %318 = vmatpush1.msra.mxu0 0.0
  %319 = vmatprep.subr.mxu0 0.0
  %320 = vmatpush1.msra.mxu0 0.0
  %321 = vmatprep.subr.mxu0 0.0
  %322 = vmatpush1.msra.mxu0 0.0
  %323 = vmatprep.subr.mxu0 0.0
  %324 = vmatpush1.msra.mxu0 0.0
  %325 = vmatprep.subr.mxu0 0.0
  %326 = vmatpush1.msra.mxu0 0.0
  %327 = vmatprep.subr.mxu0 0.0
  %328 = vmatpush1.msra.mxu0 0.0
  %329 = vmatprep.subr.mxu0 0.0
  %330 = vmatpush1.msra.mxu0 0.0
  %331 = vmatprep.subr.mxu0 0.0
  %332 = vmatpush1.msra.mxu0 0.0
  %333 = vmatprep.subr.mxu0 0.0
  %334 = vmatpush1.msra.mxu0 0.0
  %335 = vmatprep.subr.mxu0 0.0
  %336 = vmatpush1.msra.mxu0 0.0
  %337 = vmatprep.subr.mxu0 0.0
  %338 = vmatpush1.msra.mxu0 0.0
  %339 = vmatprep.subr.mxu0 0.0
  %340 = vmatpush1.msra.mxu0 0.0
  %341 = vmatprep.subr.mxu0 0.0
  %342 = vmatpush1.msra.mxu0 0.0
  %343 = vmatprep.subr.mxu0 0.0
  %344 = vmatpush1.msra.mxu0 0.0
  %345 = vmatprep.mubr.f32.mxu0 0.0
  %346 = vmatmul.mubr.f32.gmra.mrb[0].mxu0 %v234
  %v347 = vpop.f32.mrb[0].mxu0
  %v348 = vadd.f32 0.0, %v347
  %v349 = vpop.f32.mrb[0].mxu0
  %350 = vmatprep.mubr.f32.mxu0 0.0
  %351 = vmatmul.mubr.f32.gmra.mrb[0].mxu0 %v237
  %v352 = vpop.f32.mrb[0].mxu0
  %v353 = vadd.f32 0.0, %v352
  %v354 = vpop.f32.mrb[0].mxu0
  %355 = vmatprep.mubr.f32.mxu0 0.0
  %356 = vmatmul.mubr.f32.gmra.mrb[0].mxu0 %v240
  %v357 = vpop.f32.mrb[0].mxu0
  %v358 = vadd.f32 0.0, %v357
  %v359 = vpop.f32.mrb[0].mxu0
  %360 = vmatprep.mubr.f32.mxu0 0.0
  %361 = vmatmul.mubr.f32.gmra.mrb[0].mxu0 %v243
  %v362 = vpop.f32.mrb[0].mxu0
  %v363 = vadd.f32 0.0, %v362
  %v364 = vpop.f32.mrb[0].mxu0
  %365 = vmatprep.mubr.f32.mxu0 0.0
  %366 = vmatmul.mubr.f32.gmra.mrb[0].mxu0 %v246
  %v367 = vpop.f32.mrb[0].mxu0
  %v368 = vadd.f32 0.0, %v367
  %v369 = vpop.f32.mrb[0].mxu0
  %370 = vmatprep.mubr.f32.mxu0 0.0
  %371 = vmatmul.mubr.f32.gmra.mrb[0].mxu0 %v249
  %v372 = vpop.f32.mrb[0].mxu0
  %v373 = vadd.f32 0.0, %v372
  %v374 = vpop.f32.mrb[0].mxu0
  %375 = vmatprep.mubr.f32.mxu0 0.0
  %376 = vmatmul.mubr.f32.gmra.mrb[0].mxu0 %v252
  %v377 = vpop.f32.mrb[0].mxu0
  %v378 = vadd.f32 0.0, %v377
  %v379 = vpop.f32.mrb[0].mxu0
  %380 = vmatprep.mubr.f32.mxu0 0.0
  %381 = vmatmul.mubr.f32.gmra.mrb[0].mxu0 %v255
  %v382 = vpop.f32.mrb[0].mxu0
  %v383 = vadd.f32 0.0, %v382
  %v384 = vpop.f32.mrb[0].mxu0
  %385 = vmatprep.mubr.f32.mxu0 0.0
  %386 = vmatmul.mubr.f32.gmra.mrb[0].mxu0 %v258
  %v387 = vpop.f32.mrb[0].mxu0
  %v388 = vadd.f32 0.0, %v387
  %v389 = vpop.f32.mrb[0].mxu0
  %390 = vmatprep.mubr.f32.mxu0 0.0
  %391 = vmatmul.mubr.f32.gmra.mrb[0].mxu0 %v261
  %v392 = vpop.f32.mrb[0].mxu0
  %v393 = vadd.f32 0.0, %v392
  %v394 = vpop.f32.mrb[0].mxu0
  %395 = vmatprep.mubr.f32.mxu0 0.0
  %396 = vmatmul.mubr.f32.gmra.mrb[0].mxu0 %v264
  %v397 = vpop.f32.mrb[0].mxu0
  %v398 = vadd.f32 0.0, %v397
  %v399 = vpop.f32.mrb[0].mxu0
  %400 = vmatprep.mubr.f32.mxu0 0.0
  %401 = vmatmul.mubr.f32.gmra.mrb[0].mxu0 %v267
  %v402 = vpop.f32.mrb[0].mxu0
  %v403 = vadd.f32 0.0, %v402
  %v404 = vpop.f32.mrb[0].mxu0
  %405 = vmatprep.mubr.f32.mxu0 0.0
  %406 = vmatmul.mubr.f32.gmra.mrb[0].mxu0 %v270
  %v407 = vpop.f32.mrb[0].mxu0
  %v408 = vadd.f32 0.0, %v407
  %v409 = vpop.f32.mrb[0].mxu0
  %410 = vmatprep.mubr.f32.mxu0 0.0
  %411 = vmatmul.mubr.f32.gmra.mrb[0].mxu0 %v273
  %v412 = vpop.f32.mrb[0].mxu0
  %v413 = vadd.f32 0.0, %v412
  %v414 = vpop.f32.mrb[0].mxu0
  %415 = vmatprep.mubr.f32.mxu0 0.0
  %416 = vmatmul.mubr.f32.gmra.mrb[0].mxu0 %v276
  %v417 = vpop.f32.mrb[0].mxu0
  %v418 = vadd.f32 0.0, %v417
  %v419 = vpop.f32.mrb[0].mxu0
  %420 = vmatprep.mubr.f32.mxu0 0.0
  %421 = vmatmul.mubr.f32.gmra.mrb[0].mxu0 %v279
  %v422 = vpop.f32.mrb[0].mxu0
  %v423 = vadd.f32 0.0, %v422
  %v424 = vpop.f32.mrb[0].mxu0
  %425 = vdwg.mxu0
  %v426 = vld [vmem:[%s1] sm:$0xff]
  %v427 = vld [vmem:[%s1 + $0x8] sm:$0xff]
  %v428 = vld [vmem:[%s1 + $0x10] sm:$0xff]
  %v429 = vld [vmem:[%s1 + $0x18] sm:$0xff]
  %v430 = vld [vmem:[%s1 + $0x20] sm:$0xff]
  %v431 = vld [vmem:[%s1 + $0x28] sm:$0xff]
  %v432 = vld [vmem:[%s1 + $0x30] sm:$0xff]
  %v433 = vld [vmem:[%s1 + $0x38] sm:$0xff]
  %v434 = vld [vmem:[%s1 + $0x40] sm:$0xff]
  %v435 = vld [vmem:[%s1 + $0x48] sm:$0xff]
  %v436 = vld [vmem:[%s1 + $0x50] sm:$0xff]
  %v437 = vld [vmem:[%s1 + $0x58] sm:$0xff]
  %v438 = vld [vmem:[%s1 + $0x60] sm:$0xff]
  %v439 = vld [vmem:[%s1 + $0x68] sm:$0xff]
  %v440 = vld [vmem:[%s1 + $0x70] sm:$0xff]
  %v441 = vld [vmem:[%s1 + $0x78] sm:$0xff]
  %v442 = vmul.f32 %v153, %v19
  %v443 = vmul.f32 %v158, %v20
  %v444 = vmul.f32 %v163, %v21
  %v445 = vmul.f32 %v168, %v22
  %v446 = vmul.f32 %v173, %v23
  %v447 = vmul.f32 %v178, %v24
  %v448 = vmul.f32 %v183, %v25
  %v449 = vmul.f32 %v188, %v26
  %v450 = vmul.f32 %v193, %v27
  %v451 = vmul.f32 %v198, %v28
  %v452 = vmul.f32 %v203, %v29
  %v453 = vmul.f32 %v208, %v30
  %v454 = vmul.f32 %v213, %v31
  %v455 = vmul.f32 %v218, %v32
  %v456 = vmul.f32 %v223, %v33
  %v457 = vmul.f32 %v228, %v34
  %v458 = vsel %vm37, %v442, 0.0
  %459 = vadd.xlane.f32.xlu0 %v458
  %v460 = vpop.xlane.xlu0 %459
  %v461 = vsel %vm37, %v443, 0.0
  %462 = vadd.xlane.f32.xlu0 %v461
  %v463 = vpop.xlane.xlu0 %462
  %v464 = vsel %vm37, %v444, 0.0
  %465 = vadd.xlane.f32.xlu0 %v464
  %v466 = vpop.xlane.xlu0 %465
  %v467 = vsel %vm37, %v445, 0.0
  %468 = vadd.xlane.f32.xlu0 %v467
  %v469 = vpop.xlane.xlu0 %468
  %v470 = vsel %vm37, %v446, 0.0
  %471 = vadd.xlane.f32.xlu0 %v470
  %v472 = vpop.xlane.xlu0 %471
  %v473 = vsel %vm37, %v447, 0.0
  %474 = vadd.xlane.f32.xlu0 %v473
  %v475 = vpop.xlane.xlu0 %474
  %v476 = vsel %vm37, %v448, 0.0
  %477 = vadd.xlane.f32.xlu0 %v476
  %v478 = vpop.xlane.xlu0 %477
  %v479 = vsel %vm37, %v449, 0.0
  %480 = vadd.xlane.f32.xlu0 %v479
  %v481 = vpop.xlane.xlu0 %480
  %v482 = vsel %vm37, %v450, 0.0
  %483 = vadd.xlane.f32.xlu0 %v482
  %v484 = vpop.xlane.xlu0 %483
  %v485 = vsel %vm37, %v451, 0.0
  %486 = vadd.xlane.f32.xlu0 %v485
  %v487 = vpop.xlane.xlu0 %486
  %v488 = vsel %vm37, %v452, 0.0
  %489 = vadd.xlane.f32.xlu0 %v488
  %v490 = vpop.xlane.xlu0 %489
  %v491 = vsel %vm37, %v453, 0.0
  %492 = vadd.xlane.f32.xlu0 %v491
  %v493 = vpop.xlane.xlu0 %492
  %v494 = vsel %vm37, %v454, 0.0
  %495 = vadd.xlane.f32.xlu0 %v494
  %v496 = vpop.xlane.xlu0 %495
  %v497 = vsel %vm37, %v455, 0.0
  %498 = vadd.xlane.f32.xlu0 %v497
  %v499 = vpop.xlane.xlu0 %498
  %v500 = vsel %vm37, %v456, 0.0
  %501 = vadd.xlane.f32.xlu0 %v500
  %v502 = vpop.xlane.xlu0 %501
  %v503 = vsel %vm37, %v457, 0.0
  %504 = vadd.xlane.f32.xlu0 %v503
  %v505 = vpop.xlane.xlu0 %504
  %v506 = vsub.f32 %v426, %v460
  %v507 = vsub.f32 %v427, %v463
  %v508 = vsub.f32 %v428, %v466
  %v509 = vsub.f32 %v429, %v469
  %v510 = vsub.f32 %v430, %v472
  %v511 = vsub.f32 %v431, %v475
  %v512 = vsub.f32 %v432, %v478
  %v513 = vsub.f32 %v433, %v481
  %v514 = vsub.f32 %v434, %v484
  %v515 = vsub.f32 %v435, %v487
  %v516 = vsub.f32 %v436, %v490
  %v517 = vsub.f32 %v437, %v493
  %v518 = vsub.f32 %v438, %v496
  %v519 = vsub.f32 %v439, %v499
  %v520 = vsub.f32 %v440, %v502
  %v521 = vsub.f32 %v441, %v505
  %v522 = vmul.f32 %v348, %v153
  %v523 = vmul.f32 %v353, %v158
  %v524 = vmul.f32 %v358, %v163
  %v525 = vmul.f32 %v363, %v168
  %v526 = vmul.f32 %v368, %v173
  %v527 = vmul.f32 %v373, %v178
  %v528 = vmul.f32 %v378, %v183
  %v529 = vmul.f32 %v383, %v188
  %v530 = vmul.f32 %v388, %v193
  %v531 = vmul.f32 %v393, %v198
  %v532 = vmul.f32 %v398, %v203
  %v533 = vmul.f32 %v403, %v208
  %v534 = vmul.f32 %v408, %v213
  %v535 = vmul.f32 %v413, %v218
  %v536 = vmul.f32 %v418, %v223
  %v537 = vmul.f32 %v423, %v228
  %v538 = vsel %vm37, %v522, 0.0
  %539 = vadd.xlane.f32.xlu0 %v538
  %v540 = vpop.xlane.xlu0 %539
  %v541 = vsel %vm37, %v523, 0.0
  %542 = vadd.xlane.f32.xlu0 %v541
  %v543 = vpop.xlane.xlu0 %542
  %v544 = vsel %vm37, %v524, 0.0
  %545 = vadd.xlane.f32.xlu0 %v544
  %v546 = vpop.xlane.xlu0 %545
  %v547 = vsel %vm37, %v525, 0.0
  %548 = vadd.xlane.f32.xlu0 %v547
  %v549 = vpop.xlane.xlu0 %548
  %v550 = vsel %vm37, %v526, 0.0
  %551 = vadd.xlane.f32.xlu0 %v550
  %v552 = vpop.xlane.xlu0 %551
  %v553 = vsel %vm37, %v527, 0.0
  %554 = vadd.xlane.f32.xlu0 %v553
  %v555 = vpop.xlane.xlu0 %554
  %v556 = vsel %vm37, %v528, 0.0
  %557 = vadd.xlane.f32.xlu0 %v556
  %v558 = vpop.xlane.xlu0 %557
  %v559 = vsel %vm37, %v529, 0.0
  %560 = vadd.xlane.f32.xlu0 %v559
  %v561 = vpop.xlane.xlu0 %560
  %v562 = vsel %vm37, %v530, 0.0
  %563 = vadd.xlane.f32.xlu0 %v562
  %v564 = vpop.xlane.xlu0 %563
  %v565 = vsel %vm37, %v531, 0.0
  %566 = vadd.xlane.f32.xlu0 %v565
  %v567 = vpop.xlane.xlu0 %566
  %v568 = vsel %vm37, %v532, 0.0
  %569 = vadd.xlane.f32.xlu0 %v568
  %v570 = vpop.xlane.xlu0 %569
  %v571 = vsel %vm37, %v533, 0.0
  %572 = vadd.xlane.f32.xlu0 %v571
  %v573 = vpop.xlane.xlu0 %572
  %v574 = vsel %vm37, %v534, 0.0
  %575 = vadd.xlane.f32.xlu0 %v574
  %v576 = vpop.xlane.xlu0 %575
  %v577 = vsel %vm37, %v535, 0.0
  %578 = vadd.xlane.f32.xlu0 %v577
  %v579 = vpop.xlane.xlu0 %578
  %v580 = vsel %vm37, %v536, 0.0
  %581 = vadd.xlane.f32.xlu0 %v580
  %v582 = vpop.xlane.xlu0 %581
  %v583 = vsel %vm37, %v537, 0.0
  %584 = vadd.xlane.f32.xlu0 %v583
  %v585 = vpop.xlane.xlu0 %584
  %v586 = vadd.f32 %v540, %v506
  %v587 = vadd.f32 %v543, %v507
  %v588 = vadd.f32 %v546, %v508
  %v589 = vadd.f32 %v549, %v509
  %v590 = vadd.f32 %v552, %v510
  %v591 = vadd.f32 %v555, %v511
  %v592 = vadd.f32 %v558, %v512
  %v593 = vadd.f32 %v561, %v513
  %v594 = vadd.f32 %v564, %v514
  %v595 = vadd.f32 %v567, %v515
  %v596 = vadd.f32 %v570, %v516
  %v597 = vadd.f32 %v573, %v517
  %v598 = vadd.f32 %v576, %v518
  %v599 = vadd.f32 %v579, %v519
  %v600 = vadd.f32 %v582, %v520
  %v601 = vadd.f32 %v585, %v521
  %602 = vst.msk [vmem:[%s4] sm:$0xff] %vm37, %v348
  %603 = vst.msk [vmem:[%s4 + $0x8] sm:$0xff] %vm37, %v353
  %604 = vst.msk [vmem:[%s4 + $0x10] sm:$0xff] %vm37, %v358
  %605 = vst.msk [vmem:[%s4 + $0x18] sm:$0xff] %vm37, %v363
  %606 = vst.msk [vmem:[%s4 + $0x20] sm:$0xff] %vm37, %v368
  %607 = vst.msk [vmem:[%s4 + $0x28] sm:$0xff] %vm37, %v373
  %608 = vst.msk [vmem:[%s4 + $0x30] sm:$0xff] %vm37, %v378
  %609 = vst.msk [vmem:[%s4 + $0x38] sm:$0xff] %vm37, %v383
  %610 = vst.msk [vmem:[%s4 + $0x40] sm:$0xff] %vm37, %v388
  %611 = vst.msk [vmem:[%s4 + $0x48] sm:$0xff] %vm37, %v393
  %612 = vst.msk [vmem:[%s4 + $0x50] sm:$0xff] %vm37, %v398
  %613 = vst.msk [vmem:[%s4 + $0x58] sm:$0xff] %vm37, %v403
  %614 = vst.msk [vmem:[%s4 + $0x60] sm:$0xff] %vm37, %v408
  %615 = vst.msk [vmem:[%s4 + $0x68] sm:$0xff] %vm37, %v413
  %616 = vst.msk [vmem:[%s4 + $0x70] sm:$0xff] %vm37, %v418
  %617 = vst.msk [vmem:[%s4 + $0x78] sm:$0xff] %vm37, %v423
  %vm618 = vcmask 7168
  %619 = vst.msk [vmem:[%s5] sm:$0xff] %vm618, %v586
  %620 = vst.msk [vmem:[%s5 + $0x8] sm:$0xff] %vm618, %v587
  %621 = vst.msk [vmem:[%s5 + $0x10] sm:$0xff] %vm618, %v588
  %622 = vst.msk [vmem:[%s5 + $0x18] sm:$0xff] %vm618, %v589
  %623 = vst.msk [vmem:[%s5 + $0x20] sm:$0xff] %vm618, %v590
  %624 = vst.msk [vmem:[%s5 + $0x28] sm:$0xff] %vm618, %v591
  %625 = vst.msk [vmem:[%s5 + $0x30] sm:$0xff] %vm618, %v592
  %626 = vst.msk [vmem:[%s5 + $0x38] sm:$0xff] %vm618, %v593
  %627 = vst.msk [vmem:[%s5 + $0x40] sm:$0xff] %vm618, %v594
  %628 = vst.msk [vmem:[%s5 + $0x48] sm:$0xff] %vm618, %v595
  %629 = vst.msk [vmem:[%s5 + $0x50] sm:$0xff] %vm618, %v596
  %630 = vst.msk [vmem:[%s5 + $0x58] sm:$0xff] %vm618, %v597
  %631 = vst.msk [vmem:[%s5 + $0x60] sm:$0xff] %vm618, %v598
  %632 = vst.msk [vmem:[%s5 + $0x68] sm:$0xff] %vm618, %v599
  %633 = vst.msk [vmem:[%s5 + $0x70] sm:$0xff] %vm618, %v600
  %634 = vst.msk [vmem:[%s5 + $0x78] sm:$0xff] %vm618, %v601
  // Predicated region
  $region18: #{gram_layer_forward.1} parent=0 // pred_check
    _
  $region19: #{gram_layer_forward.1} parent=0 // pred_check_branch
    %636 = sbr.rel (0) target = $region21
  $region20: #{gram_layer_forward.1} parent=0 // pred_region
    _
  $region21: #{gram_layer_forward.1} parent=0 // pred_fallthru
    _
  // Predicated region
  $region22: #{gram_layer_forward.1} parent=0 // pred_check
    _
  $region23: #{gram_layer_forward.1} parent=0 // pred_check_branch
    %638 = sbr.rel (0) target = $region25
  $region24: #{gram_layer_forward.1} parent=0 // pred_region
    _
  $region25: #{gram_layer_forward.1} parent=0 // pred_fallthru
    _
  // Predicated region
  $region26: #{gram_layer_forward.1} parent=0 // pred_check
    _
  $region27: #{gram_layer_forward.1} parent=0 // pred_check_branch
    %640 = sbr.rel (0) target = $region29
  $region28: #{gram_layer_forward.1} parent=0 // pred_region
    _
  $region29: #{gram_layer_forward.1} parent=0 // pred_fallthru
    _
  // Predicated region
  $region30: #{gram_layer_forward.1} parent=0 // pred_check
    _
  $region31: #{gram_layer_forward.1} parent=0 // pred_check_branch
    %642 = sbr.rel (0) target = $region33
  $region32: #{gram_layer_forward.1} parent=0 // pred_region
    _
  $region33: #{gram_layer_forward.1} parent=0 // pred_fallthru
    _

</llo_original>
